<compile_context>
chip_gen: v7x
topology: tpu7x:2x2x1
jax: 0.10.0
libtpu: 0.0.40
codegen_flags: <defaults>
</compile_context>

<pallas_src>
import functools
import math

import jax
import jax.numpy as jnp
from jax.experimental import pallas as pl
from jax.experimental.pallas import tpu as pltpu


# ----------------------------------------------------------------------------
# Helpers (traced into the Pallas body; also reused by the pure-JAX reference)
# ----------------------------------------------------------------------------
def _ln(x, g, b, eps=1e-12):
    mean = jnp.mean(x, axis=-1, keepdims=True)
    var = jnp.mean((x - mean) ** 2, axis=-1, keepdims=True)
    return (x - mean) * jax.lax.rsqrt(var + eps) * g + b


def _gelu_tanh(x):
    # TODO(synk): HF BertIntermediate default is exact erf GELU; tanh approx
    #             differs at the ~1e-3 level, acceptable here.
    c = 0.7978845608028654
    return 0.5 * x * (1.0 + jnp.tanh(c * (x + 0.044715 * x * x * x)))


# ----------------------------------------------------------------------------
# Fused kernel: one grid step = one transformer layer over the whole batch.
# ----------------------------------------------------------------------------
def _bert_kernel(x_ref, mask_ref,
                 embg_ref, embb_ref,
                 wqkv_ref, bqkv_ref, wo_ref, bo_ref,
                 ln1g_ref, ln1b_ref,
                 wi_ref, bi_ref, wp_ref, bp_ref,
                 ln2g_ref, ln2b_ref,
                 pw_ref, pb_ref, cw_ref, cb_ref,
                 probs_ref,
                 x_scr,
                 *, batch, seq, n_heads, head_dim):
    layer = pl.program_id(0)
    n_layers = pl.num_programs(0)
    hidden = n_heads * head_dim
    bs = batch * seq
    scale = 1.0 / math.sqrt(head_dim)
    bf16 = jnp.bfloat16
    f32 = jnp.float32

    @pl.when(layer == 0)
    def _():
        # Embedding LayerNorm seeds the VMEM-resident carry; zero the output.
        x_scr[...] = _ln(x_ref[...], embg_ref[...], embb_ref[...])
        probs_ref[...] = jnp.zeros_like(probs_ref)

    x = x_scr[...]                                          # (B*S, H) f32 carry

    # ---- fused QKV: single (B*S,H)x(H,3H) MXU pass --------------------------
    qkv = jnp.dot(x.astype(bf16), wqkv_ref[...],
                  preferred_element_type=f32) + bqkv_ref[...]       # (B*S, 3H)
    qkv3 = qkv.reshape(batch, seq, 3 * hidden)              # (B, S, 3H)

    # ---- multi-head attention as head-batched contractions ------------------
    # Heads are stacked along the LEADING axis (index = h*B + b) — cheap
    # leading-dim concat, no lane-dim shuffles, no explicit K transpose.
    def _heads(col0):
        parts = [qkv3[:, :, col0 + h * head_dim: col0 + (h + 1) * head_dim]
                 for h in range(n_heads)]
        return jnp.concatenate(parts, axis=0)               # (NH*B, S, DH) f32

    qs = _heads(0).astype(bf16)                              # bf16 cast once
    ks = _heads(hidden).astype(bf16)
    vs = _heads(2 * hidden).astype(bf16)

    s = jnp.einsum('bqd,bkd->bqk', qs, ks,
                   preferred_element_type=f32) * scale       # (NH*B, S, S)
    s = s + mask_ref[...]                                    # (NH*B, 1, S) additive mask
    s = s - jnp.max(s, axis=-1, keepdims=True)
    p = jnp.exp(s)
    p = p * pl.reciprocal(jnp.sum(p, axis=-1, keepdims=True), approx=True)
    ctx = jnp.einsum('bqk,bkd->bqd', p.astype(bf16), vs,
                     preferred_element_type=f32)             # (NH*B, S, DH)

    # ---- output projection folded per head (no lane concatenate) ------------
    ctx3 = ctx.reshape(n_heads, bs, head_dim).astype(bf16)   # (NH, B*S, DH)
    attn = jnp.einsum('hnd,hdo->hno', ctx3, wo_ref[...],
                      preferred_element_type=f32)            # (NH, B*S, H)
    attn = jnp.sum(attn, axis=0) + bo_ref[...]               # (B*S, H)
    x = _ln(attn + x, ln1g_ref[...], ln1b_ref[...])

    # ---- FFN -----------------------------------------------------------------
    h_mid = _gelu_tanh(jnp.dot(x.astype(bf16), wi_ref[...],
                               preferred_element_type=f32) + bi_ref[...])
    ffn = jnp.dot(h_mid.astype(bf16), wp_ref[...],
                  preferred_element_type=f32) + bp_ref[...]
    x = _ln(ffn + x, ln2g_ref[...], ln2b_ref[...])
    x_scr[...] = x

    # ---- fused classification head on the last layer ------------------------
    @pl.when(layer == n_layers - 1)
    def _():
        cls = x.reshape(batch, seq, hidden)[:, 0, :]         # CLS rows (B, H)
        pooled = jnp.tanh(jnp.dot(cls.astype(bf16), pw_ref[...],
                                  preferred_element_type=f32) + pb_ref[...])
        # Dropout(p=0.3): eval-mode identity.
        logits = jnp.dot(pooled.astype(bf16), cw_ref[...],
                         preferred_element_type=f32) + cb_ref[...]
        logits = logits - jnp.max(logits, axis=-1, keepdims=True)
        e = jnp.exp(logits)
        # exact divide so rows sum to 1 (matches nn.Softmax(dim=1))
        probs_ref[...] = e / jnp.sum(e, axis=-1, keepdims=True)


# ----------------------------------------------------------------------------
# Parameter packing / VMEM budgeting
# ----------------------------------------------------------------------------
def _stack_layer_params(layers, n_heads):
    bf16, f32 = jnp.bfloat16, jnp.float32
    hidden = layers[0]["wo"].shape[0]
    head_dim = hidden // n_heads
    st = lambda name: jnp.stack([lp[name] for lp in layers])
    return dict(
        wqkv=jnp.stack([jnp.concatenate([lp["wq"], lp["wk"], lp["wv"]], axis=1)
                        for lp in layers]).astype(bf16),              # (L,H,3H)
        bqkv=jnp.stack([jnp.concatenate([lp["bq"], lp["bk"], lp["bv"]])
                        for lp in layers])[:, None, :].astype(f32),   # (L,1,3H)
        # wo rows grouped per head -> (L,NH,DH,H): lets the kernel fold the
        # output projection per head without a lane-dim concatenate.
        wo=jnp.stack([lp["wo"].reshape(n_heads, head_dim, hidden)
                      for lp in layers]).astype(bf16),
        bo=st("bo")[:, None, :].astype(f32),
        ln1g=st("ln1_g")[:, None, :].astype(f32),
        ln1b=st("ln1_b")[:, None, :].astype(f32),
        wi=st("wi").astype(bf16), bi=st("bi")[:, None, :].astype(f32),
        wp=st("wp").astype(bf16), bp=st("bp")[:, None, :].astype(f32),
        ln2g=st("ln2_g")[:, None, :].astype(f32),
        ln2b=st("ln2_b")[:, None, :].astype(f32),
    )


def _vmem_budget_bytes(stk, resident_bytes):
    # Double-buffered per-layer weight slabs + resident carry/constants +
    # headroom for f32 intermediates, clamped to v7x's 64 MiB physical VMEM.
    per_layer = sum(int(v.nbytes) // v.shape[0] for v in stk.values())
    need = 2 * per_layer + resident_bytes
    return int(min(max(2 * need + (8 << 20), 32 << 20), 64 << 20))


# ----------------------------------------------------------------------------
# Forward pass (mirrors BertClassifier.forward, post-tokenization)
# ----------------------------------------------------------------------------
def bert_classifier_forward(params, input_ids, attention_mask, *, n_heads):
    B, S = input_ids.shape
    H = params["word_emb"].shape[1]
    DH = H // n_heads
    L = len(params["layers"])
    stk = _stack_layer_params(params["layers"], n_heads)
    I = stk["wi"].shape[-1]
    C = params["cls_w"].shape[1]

    # --- embeddings (token/position gather is tiny JAX glue) ---
    tok = params["word_emb"][input_ids]                     # (B,S,H)
    pos = params["pos_emb"][jnp.arange(S)][None, :, :]      # (1,S,H)
    typ = params["type_emb"][0][None, None, :]              # (1,1,H)
    x_emb = (tok + pos + typ).astype(jnp.float32).reshape(B * S, H)

    # Additive mask pre-expanded to the (head, batch) leading order used
    # in-kernel (tiny: NH*B*S floats), so attention stays 3-D throughout.
    mask_add = (1.0 - attention_mask.astype(jnp.float32)) * -10000.0   # (B,S)
    mask_hb = jnp.broadcast_to(mask_add[None, :, None, :],
                               (n_heads, B, 1, S)).reshape(n_heads * B, 1, S)

    per_layer3 = lambda l: (l, 0, 0)
    per_layer4 = lambda l: (l, 0, 0, 0)
    const2 = lambda l: (0, 0)
    const3 = lambda l: (0, 0, 0)

    in_specs = [
        pl.BlockSpec((B * S, H), const2),                   # x_emb (read at layer 0)
        pl.BlockSpec((n_heads * B, 1, S), const3),          # additive mask
        pl.BlockSpec((1, H), const2),                       # emb LN gamma
        pl.BlockSpec((1, H), const2),                       # emb LN beta
        pl.BlockSpec((None, H, 3 * H), per_layer3),         # wqkv
        pl.BlockSpec((None, 1, 3 * H), per_layer3),         # bqkv
        pl.BlockSpec((None, n_heads, DH, H), per_layer4),   # wo (per-head)
        pl.BlockSpec((None, 1, H), per_layer3),             # bo
        pl.BlockSpec((None, 1, H), per_layer3),             # ln1 gamma
        pl.BlockSpec((None, 1, H), per_layer3),             # ln1 beta
        pl.BlockSpec((None, H, I), per_layer3),             # wi
        pl.BlockSpec((None, 1, I), per_layer3),             # bi
        pl.BlockSpec((None, I, H), per_layer3),             # wp
        pl.BlockSpec((None, 1, H), per_layer3),             # bp
        pl.BlockSpec((None, 1, H), per_layer3),             # ln2 gamma
        pl.BlockSpec((None, 1, H), per_layer3),             # ln2 beta
        pl.BlockSpec((H, H), const2),                       # pooler W
        pl.BlockSpec((1, H), const2),                       # pooler b
        pl.BlockSpec((H, C), const2),                       # classifier W
        pl.BlockSpec((1, C), const2),                       # classifier b
    ]

    resident_bytes = 2 * x_emb.nbytes + mask_hb.nbytes + 4 * H * 4 \
        + H * H * 2 + H * C * 2 + (H + C) * 4
    vmem_bytes = _vmem_budget_bytes(stk, resident_bytes)

    kernel = functools.partial(_bert_kernel, batch=B, seq=S,
                               n_heads=n_heads, head_dim=DH)
    return pl.pallas_call(
        kernel,
        out_shape=jax.ShapeDtypeStruct((B, C), jnp.float32),
        grid=(L,),
        in_specs=in_specs,
        out_specs=pl.BlockSpec((B, C), const2),
        scratch_shapes=[pltpu.VMEM((B * S, H), jnp.float32)],   # resident activation
        compiler_params=pltpu.CompilerParams(
            dimension_semantics=("arbitrary",),
            vmem_limit_bytes=vmem_bytes),
    )(x_emb, mask_hb,
      params["emb_ln_g"].reshape(1, H).astype(jnp.float32),
      params["emb_ln_b"].reshape(1, H).astype(jnp.float32),
      stk["wqkv"], stk["bqkv"], stk["wo"], stk["bo"],
      stk["ln1g"], stk["ln1b"],
      stk["wi"], stk["bi"], stk["wp"], stk["bp"],
      stk["ln2g"], stk["ln2b"],
      params["pool_w"].astype(jnp.bfloat16),
      params["pool_b"].reshape(1, H).astype(jnp.float32),
      params["cls_w"].astype(jnp.bfloat16),
      params["cls_b"].reshape(1, C).astype(jnp.float32))


# ----------------------------------------------------------------------------
# Pure-JAX f32 reference (same math, exact softmax) for tolerance checking
# ----------------------------------------------------------------------------
def bert_classifier_reference(params, input_ids, attention_mask, *, n_heads):
    B, S = input_ids.shape
    H = params["word_emb"].shape[1]
    DH = H // n_heads
    x = (params["word_emb"][input_ids]
         + params["pos_emb"][jnp.arange(S)][None, :, :]
         + params["type_emb"][0][None, None, :]).astype(jnp.float32)
    x = _ln(x, params["emb_ln_g"], params["emb_ln_b"])
    mask = ((1.0 - attention_mask.astype(jnp.float32)) * -10000.0)[:, None, None, :]
    for lp in params["layers"]:
        q = (x @ lp["wq"] + lp["bq"]).reshape(B, S, n_heads, DH).transpose(0, 2, 1, 3)
        k = (x @ lp["wk"] + lp["bk"]).reshape(B, S, n_heads, DH).transpose(0, 2, 1, 3)
        v = (x @ lp["wv"] + lp["bv"]).reshape(B, S, n_heads, DH).transpose(0, 2, 1, 3)
        s = jnp.einsum('bhqd,bhkd->bhqk', q, k) / math.sqrt(DH) + mask
        p = jax.nn.softmax(s, axis=-1)
        ctx = jnp.einsum('bhqk,bhkd->bhqd', p, v).transpose(0, 2, 1, 3).reshape(B, S, H)
        x = _ln(ctx @ lp["wo"] + lp["bo"] + x, lp["ln1_g"], lp["ln1_b"])
        h = _gelu_tanh(x @ lp["wi"] + lp["bi"])
        x = _ln(h @ lp["wp"] + lp["bp"] + x, lp["ln2_g"], lp["ln2_b"])
    pooled = jnp.tanh(x[:, 0, :] @ params["pool_w"] + params["pool_b"])
    logits = pooled @ params["cls_w"] + params["cls_b"]
    return jax.nn.softmax(logits, axis=1)


# ----------------------------------------------------------------------------
# Parameter init (deterministic, synthetic "bert-base"-like but tiny)
# ----------------------------------------------------------------------------
def init_params(key, *, vocab, max_pos, hidden, n_heads, inter, n_layers,
                n_classes):
    def nrm(k, shape):
        return jax.random.normal(k, shape, jnp.float32) * 0.02

    keys = iter(jax.random.split(key, 16 + n_layers * 16))
    nk = lambda: next(keys)

    params = {
        "word_emb": nrm(nk(), (vocab, hidden)),
        "pos_emb": nrm(nk(), (max_pos, hidden)),
        "type_emb": nrm(nk(), (2, hidden)),
        "emb_ln_g": jnp.ones((hidden,), jnp.float32),
        "emb_ln_b": jnp.zeros((hidden,), jnp.float32),
        "pool_w": nrm(nk(), (hidden, hidden)),
        "pool_b": jnp.zeros((hidden,), jnp.float32),
        "cls_w": nrm(nk(), (hidden, n_classes)),
        "cls_b": jnp.zeros((n_classes,), jnp.float32),
        "layers": [],
    }
    for _ in range(n_layers):
        params["layers"].append({
            "wq": nrm(nk(), (hidden, hidden)), "bq": jnp.zeros((hidden,)),
            "wk": nrm(nk(), (hidden, hidden)), "bk": jnp.zeros((hidden,)),
            "wv": nrm(nk(), (hidden, hidden)), "bv": jnp.zeros((hidden,)),
            "wo": nrm(nk(), (hidden, hidden)), "bo": jnp.zeros((hidden,)),
            "ln1_g": jnp.ones((hidden,)), "ln1_b": jnp.zeros((hidden,)),
            "wi": nrm(nk(), (hidden, inter)), "bi": jnp.zeros((inter,)),
            "wp": nrm(nk(), (inter, hidden)), "bp": jnp.zeros((hidden,)),
            "ln2_g": jnp.ones((hidden,)), "ln2_b": jnp.zeros((hidden,)),
        })
    return params


# ----------------------------------------------------------------------------
if __name__ == "__main__":
    # small, forward-consistent shapes
    B, S = 2, 8          # batch, max_len (seq)
    VOCAB = 100
    HIDDEN = 32
    N_HEADS = 2
    INTER = 64
    N_LAYERS = 2
    N_CLASSES = 4

    key = jax.random.PRNGKey(0)
    k_param, k_ids = jax.random.split(key)

    params = init_params(k_param, vocab=VOCAB, max_pos=S, hidden=HIDDEN,
                         n_heads=N_HEADS, inter=INTER, n_layers=N_LAYERS,
                         n_classes=N_CLASSES)

    input_ids = jax.random.randint(k_ids, (B, S), 0, VOCAB, dtype=jnp.int32)
    # mask: first sequence fully valid, second has 2 padded positions
    attention_mask = jnp.array(
        [[1] * S, [1] * (S - 2) + [0] * 2], dtype=jnp.int32)

    fwd = jax.jit(functools.partial(bert_classifier_forward, n_heads=N_HEADS))
    probs = jax.block_until_ready(fwd(params, input_ids, attention_mask))

    assert probs.shape == (B, N_CLASSES)
    assert bool(jnp.all(jnp.isfinite(probs)))
    # rows sum to 1 (exact softmax over dim=1 in the kernel)
    assert bool(jnp.allclose(jnp.sum(probs, axis=1), 1.0, atol=1e-5))

    # loose tolerance vs f32 reference (bf16 MXU inputs + approx reciprocal)
    ref = bert_classifier_reference(params, input_ids, attention_mask,
                                    n_heads=N_HEADS)
    assert bool(jnp.allclose(probs, ref, atol=5e-2)), (probs, ref)

    print("KERNEL_OK")
</pallas_src>

<mosaic_0001>
module attributes {stable_mosaic.version = 11 : i64} {
  func.func @_bert_kernel(%arg0: i32, %arg1: memref<16x32xf32, #tpu.memory_space<vmem>>, %arg2: memref<4x1x8xf32, #tpu.memory_space<vmem>>, %arg3: memref<1x32xf32, #tpu.memory_space<vmem>>, %arg4: memref<1x32xf32, #tpu.memory_space<vmem>>, %arg5: memref<1x32x96xbf16, #tpu.memory_space<vmem>>, %arg6: memref<1x1x96xf32, #tpu.memory_space<vmem>>, %arg7: memref<1x2x16x32xbf16, #tpu.memory_space<vmem>>, %arg8: memref<1x1x32xf32, #tpu.memory_space<vmem>>, %arg9: memref<1x1x32xf32, #tpu.memory_space<vmem>>, %arg10: memref<1x1x32xf32, #tpu.memory_space<vmem>>, %arg11: memref<1x32x64xbf16, #tpu.memory_space<vmem>>, %arg12: memref<1x1x64xf32, #tpu.memory_space<vmem>>, %arg13: memref<1x64x32xbf16, #tpu.memory_space<vmem>>, %arg14: memref<1x1x32xf32, #tpu.memory_space<vmem>>, %arg15: memref<1x1x32xf32, #tpu.memory_space<vmem>>, %arg16: memref<1x1x32xf32, #tpu.memory_space<vmem>>, %arg17: memref<32x32xbf16, #tpu.memory_space<vmem>>, %arg18: memref<1x32xf32, #tpu.memory_space<vmem>>, %arg19: memref<32x4xbf16, #tpu.memory_space<vmem>>, %arg20: memref<1x4xf32, #tpu.memory_space<vmem>>, %arg21: memref<2x4xf32, #tpu.memory_space<vmem>>, %arg22: memref<16x32xf32, #tpu.memory_space<vmem>>) attributes {dimension_semantics = [#tpu.dimension_semantics<arbitrary>], iteration_bounds = array<i64: 2>, scalar_prefetch = 0 : i64, scratch_operands = 1 : i64, tpu.core_type = #tpu.core_type<tc>, window_params = [{pipeline_mode = #tpu.pipeline_mode<synchronous>, transform_indices = @transform_0, window_bounds = array<i64: 16, 32>}, {pipeline_mode = #tpu.pipeline_mode<synchronous>, transform_indices = @transform_1, window_bounds = array<i64: 4, 1, 8>}, {pipeline_mode = #tpu.pipeline_mode<synchronous>, transform_indices = @transform_2, window_bounds = array<i64: 1, 32>}, {pipeline_mode = #tpu.pipeline_mode<synchronous>, transform_indices = @transform_3, window_bounds = array<i64: 1, 32>}, {transform_indices = @transform_4, window_bounds = array<i64: 1, 32, 96>}, {transform_indices = @transform_5, window_bounds = array<i64: 1, 1, 96>}, {transform_indices = @transform_6, window_bounds = array<i64: 1, 2, 16, 32>}, {transform_indices = @transform_7, window_bounds = array<i64: 1, 1, 32>}, {transform_indices = @transform_8, window_bounds = array<i64: 1, 1, 32>}, {transform_indices = @transform_9, window_bounds = array<i64: 1, 1, 32>}, {transform_indices = @transform_10, window_bounds = array<i64: 1, 32, 64>}, {transform_indices = @transform_11, window_bounds = array<i64: 1, 1, 64>}, {transform_indices = @transform_12, window_bounds = array<i64: 1, 64, 32>}, {transform_indices = @transform_13, window_bounds = array<i64: 1, 1, 32>}, {transform_indices = @transform_14, window_bounds = array<i64: 1, 1, 32>}, {transform_indices = @transform_15, window_bounds = array<i64: 1, 1, 32>}, {pipeline_mode = #tpu.pipeline_mode<synchronous>, transform_indices = @transform_16, window_bounds = array<i64: 32, 32>}, {pipeline_mode = #tpu.pipeline_mode<synchronous>, transform_indices = @transform_17, window_bounds = array<i64: 1, 32>}, {pipeline_mode = #tpu.pipeline_mode<synchronous>, transform_indices = @transform_18, window_bounds = array<i64: 32, 4>}, {pipeline_mode = #tpu.pipeline_mode<synchronous>, transform_indices = @transform_19, window_bounds = array<i64: 1, 4>}, {pipeline_mode = #tpu.pipeline_mode<synchronous>, transform_indices = @transform_20, window_bounds = array<i64: 2, 4>}]} {
    %c0_i32 = arith.constant 0 : i32
    %0 = arith.cmpi eq, %arg0, %c0_i32 : i32
    %1 = arith.extui %0 : i1 to i32
    %c0_i32_0 = arith.constant 0 : i32
    %2 = arith.cmpi ne, %1, %c0_i32_0 : i32
    scf.if %2 {
      %c0_68 = arith.constant 0 : index
      %c0_69 = arith.constant 0 : index
      %140 = vector.load %arg1[%c0_68, %c0_69] : memref<16x32xf32, #tpu.memory_space<vmem>>, vector<16x32xf32>
      %c0_70 = arith.constant 0 : index
      %c0_71 = arith.constant 0 : index
      %141 = vector.load %arg3[%c0_70, %c0_71] : memref<1x32xf32, #tpu.memory_space<vmem>>, vector<1x32xf32>
      %c0_72 = arith.constant 0 : index
      %c0_73 = arith.constant 0 : index
      %142 = vector.load %arg4[%c0_72, %c0_73] : memref<1x32xf32, #tpu.memory_space<vmem>>, vector<1x32xf32>
      %cst_74 = arith.constant dense<0.000000e+00> : vector<16xf32>
      %143 = vector.multi_reduction <add>, %140, %cst_74 [1] : vector<16x32xf32> to vector<16xf32>
      %144 = vector.shape_cast %143 : vector<16xf32> to vector<16x1xf32>
      %cst_75 = arith.constant 3.200000e+01 : f32
      %145 = vector.broadcast %cst_75 : f32 to vector<16x1xf32>
      %146 = arith.divf %144, %145 : vector<16x1xf32>
      %147 = vector.broadcast %146 : vector<16x1xf32> to vector<16x32xf32>
      %148 = arith.subf %140, %147 : vector<16x32xf32>
      %149 = arith.mulf %148, %148 : vector<16x32xf32>
      %cst_76 = arith.constant dense<0.000000e+00> : vector<16xf32>
      %150 = vector.multi_reduction <add>, %149, %cst_76 [1] : vector<16x32xf32> to vector<16xf32>
      %151 = vector.shape_cast %150 : vector<16xf32> to vector<16x1xf32>
      %cst_77 = arith.constant 3.200000e+01 : f32
      %152 = vector.broadcast %cst_77 : f32 to vector<16x1xf32>
      %153 = arith.divf %151, %152 : vector<16x1xf32>
      %154 = vector.broadcast %146 : vector<16x1xf32> to vector<16x32xf32>
      %155 = arith.subf %140, %154 : vector<16x32xf32>
      %cst_78 = arith.constant 9.99999996E-13 : f32
      %156 = vector.broadcast %cst_78 : f32 to vector<16x1xf32>
      %157 = arith.addf %153, %156 : vector<16x1xf32>
      %158 = math.rsqrt %157 : vector<16x1xf32>
      %159 = vector.broadcast %158 : vector<16x1xf32> to vector<16x32xf32>
      %160 = arith.mulf %155, %159 : vector<16x32xf32>
      %161 = vector.broadcast %141 : vector<1x32xf32> to vector<16x32xf32>
      %162 = arith.mulf %160, %161 : vector<16x32xf32>
      %163 = vector.broadcast %142 : vector<1x32xf32> to vector<16x32xf32>
      %164 = arith.addf %162, %163 : vector<16x32xf32>
      %c0_79 = arith.constant 0 : index
      %c0_80 = arith.constant 0 : index
      %165 = vector.load %arg22[%c0_79, %c0_80] : memref<16x32xf32, #tpu.memory_space<vmem>>, vector<16x32xf32>
      tpu.vector_store %arg22[%c0_79, %c0_80], %164 {strides = array<i32>} : memref<16x32xf32, #tpu.memory_space<vmem>>, vector<16x32xf32>,
      %cst_81 = arith.constant 0.000000e+00 : f32
      %166 = vector.broadcast %cst_81 : f32 to vector<2x4xf32>
      %c0_82 = arith.constant 0 : index
      %c0_83 = arith.constant 0 : index
      %167 = vector.load %arg21[%c0_82, %c0_83] : memref<2x4xf32, #tpu.memory_space<vmem>>, vector<2x4xf32>
      tpu.vector_store %arg21[%c0_82, %c0_83], %166 {strides = array<i32>} : memref<2x4xf32, #tpu.memory_space<vmem>>, vector<2x4xf32>,
    } else {
    }
    %c0 = arith.constant 0 : index
    %c0_1 = arith.constant 0 : index
    %3 = vector.load %arg22[%c0, %c0_1] : memref<16x32xf32, #tpu.memory_space<vmem>>, vector<16x32xf32>
    %4 = arith.truncf %3 : vector<16x32xf32> to vector<16x32xbf16>
    %c0_2 = arith.constant 0 : index
    %c0_3 = arith.constant 0 : index
    %c0_4 = arith.constant 0 : index
    %5 = vector.load %arg5[%c0_2, %c0_3, %c0_4] : memref<1x32x96xbf16, #tpu.memory_space<vmem>>, vector<1x32x96xbf16>
    %6 = vector.shape_cast %5 : vector<1x32x96xbf16> to vector<32x96xbf16>
    %cst = arith.constant dense<0.000000e+00> : vector<16x96xf32>
    %7 = tpu.matmul %4, %6, %cst {dimension_numbers = #tpu.dot_dimension_numbers<[1], [0], [0], [1], [0, 0, 1, 1], [], []>} : vector<16x32xbf16>, vector<32x96xbf16>, vector<16x96xf32> -> vector<16x96xf32>
    %c0_5 = arith.constant 0 : index
    %c0_6 = arith.constant 0 : index
    %c0_7 = arith.constant 0 : index
    %8 = vector.load %arg6[%c0_5, %c0_6, %c0_7] : memref<1x1x96xf32, #tpu.memory_space<vmem>>, vector<1x1x96xf32>
    %9 = vector.shape_cast %8 : vector<1x1x96xf32> to vector<1x96xf32>
    %10 = vector.broadcast %9 : vector<1x96xf32> to vector<16x96xf32>
    %11 = arith.addf %7, %10 : vector<16x96xf32>
    %12 = vector.shape_cast %11 : vector<16x96xf32> to vector<2x8x96xf32>
    %13 = vector.extract_strided_slice %12 {offsets = [0, 0, 0], sizes = [2, 8, 16], strides = [1, 1, 1]} : vector<2x8x96xf32> to vector<2x8x16xf32>
    %14 = vector.extract_strided_slice %12 {offsets = [0, 0, 16], sizes = [2, 8, 16], strides = [1, 1, 1]} : vector<2x8x96xf32> to vector<2x8x16xf32>
    %15 = tpu.concatenate %13, %14 in 0 : vector<2x8x16xf32>, vector<2x8x16xf32> -> vector<4x8x16xf32>
    %16 = arith.truncf %15 : vector<4x8x16xf32> to vector<4x8x16xbf16>
    %17 = vector.extract_strided_slice %12 {offsets = [0, 0, 32], sizes = [2, 8, 16], strides = [1, 1, 1]} : vector<2x8x96xf32> to vector<2x8x16xf32>
    %18 = vector.extract_strided_slice %12 {offsets = [0, 0, 48], sizes = [2, 8, 16], strides = [1, 1, 1]} : vector<2x8x96xf32> to vector<2x8x16xf32>
    %19 = tpu.concatenate %17, %18 in 0 : vector<2x8x16xf32>, vector<2x8x16xf32> -> vector<4x8x16xf32>
    %20 = arith.truncf %19 : vector<4x8x16xf32> to vector<4x8x16xbf16>
    %21 = vector.extract_strided_slice %12 {offsets = [0, 0, 64], sizes = [2, 8, 16], strides = [1, 1, 1]} : vector<2x8x96xf32> to vector<2x8x16xf32>
    %22 = vector.extract_strided_slice %12 {offsets = [0, 0, 80], sizes = [2, 8, 16], strides = [1, 1, 1]} : vector<2x8x96xf32> to vector<2x8x16xf32>
    %23 = tpu.concatenate %21, %22 in 0 : vector<2x8x16xf32>, vector<2x8x16xf32> -> vector<4x8x16xf32>
    %24 = arith.truncf %23 : vector<4x8x16xf32> to vector<4x8x16xbf16>
    "tpu.trace_start"() <{level = 10 : i32, message = "bqd,bkd->bqk"}> : () -> ()
    %cst_8 = arith.constant dense<0.000000e+00> : vector<4x8x8xf32>
    %25 = tpu.matmul %16, %20, %cst_8 {dimension_numbers = #tpu.dot_dimension_numbers<[2], [2], [1], [1], [0, 0, 0, 1, 1, 1], [0], [0]>} : vector<4x8x16xbf16>, vector<4x8x16xbf16>, vector<4x8x8xf32> -> vector<4x8x8xf32>
    "tpu.trace_stop"() : () -> ()
    %cst_9 = arith.constant 2.500000e-01 : f32
    %26 = vector.broadcast %cst_9 : f32 to vector<4x8x8xf32>
    %27 = arith.mulf %25, %26 : vector<4x8x8xf32>
    %c0_10 = arith.constant 0 : index
    %c0_11 = arith.constant 0 : index
    %c0_12 = arith.constant 0 : index
    %28 = vector.load %arg2[%c0_10, %c0_11, %c0_12] : memref<4x1x8xf32, #tpu.memory_space<vmem>>, vector<4x1x8xf32>
    %29 = vector.broadcast %28 : vector<4x1x8xf32> to vector<4x8x8xf32>
    %30 = arith.addf %27, %29 : vector<4x8x8xf32>
    %cst_13 = arith.constant dense<0xFF800000> : vector<4x8xf32>
    %31 = vector.multi_reduction <maximumf>, %30, %cst_13 [2] : vector<4x8x8xf32> to vector<4x8xf32>
    %32 = vector.shape_cast %31 : vector<4x8xf32> to vector<4x8x1xf32>
    %33 = vector.broadcast %32 : vector<4x8x1xf32> to vector<4x8x8xf32>
    %34 = arith.subf %30, %33 : vector<4x8x8xf32>
    %35 = math.exp %34 : vector<4x8x8xf32>
    %cst_14 = arith.constant dense<0.000000e+00> : vector<4x8xf32>
    %36 = vector.multi_reduction <add>, %35, %cst_14 [2] : vector<4x8x8xf32> to vector<4x8xf32>
    %37 = vector.shape_cast %36 : vector<4x8xf32> to vector<4x8x1xf32>
    %38 = tpu.reciprocal %37 {approx = true} : vector<4x8x1xf32> -> vector<4x8x1xf32>
    %39 = vector.broadcast %38 : vector<4x8x1xf32> to vector<4x8x8xf32>
    %40 = arith.mulf %35, %39 : vector<4x8x8xf32>
    %41 = arith.truncf %40 : vector<4x8x8xf32> to vector<4x8x8xbf16>
    "tpu.trace_start"() <{level = 10 : i32, message = "bqk,bkd->bqd"}> : () -> ()
    %cst_15 = arith.constant dense<0.000000e+00> : vector<4x8x16xf32>
    %42 = tpu.matmul %41, %24, %cst_15 {dimension_numbers = #tpu.dot_dimension_numbers<[2], [1], [1], [2], [0, 0, 0, 1, 1, 2], [0], [0]>} : vector<4x8x8xbf16>, vector<4x8x16xbf16>, vector<4x8x16xf32> -> vector<4x8x16xf32>
    "tpu.trace_stop"() : () -> ()
    %43 = vector.shape_cast %42 : vector<4x8x16xf32> to vector<2x16x16xf32>
    %44 = arith.truncf %43 : vector<2x16x16xf32> to vector<2x16x16xbf16>
    %c0_16 = arith.constant 0 : index
    %c0_17 = arith.constant 0 : index
    %c0_18 = arith.constant 0 : index
    %c0_19 = arith.constant 0 : index
    %45 = vector.load %arg7[%c0_16, %c0_17, %c0_18, %c0_19] : memref<1x2x16x32xbf16, #tpu.memory_space<vmem>>, vector<1x2x16x32xbf16>
    %46 = vector.shape_cast %45 : vector<1x2x16x32xbf16> to vector<2x16x32xbf16>
    "tpu.trace_start"() <{level = 10 : i32, message = "hnd,hdo->hno"}> : () -> ()
    %cst_20 = arith.constant dense<0.000000e+00> : vector<2x16x32xf32>
    %47 = tpu.matmul %44, %46, %cst_20 {dimension_numbers = #tpu.dot_dimension_numbers<[2], [1], [1], [2], [0, 0, 0, 1, 1, 2], [0], [0]>} : vector<2x16x16xbf16>, vector<2x16x32xbf16>, vector<2x16x32xf32> -> vector<2x16x32xf32>
    "tpu.trace_stop"() : () -> ()
    %cst_21 = arith.constant dense<0.000000e+00> : vector<16x32xf32>
    %48 = vector.multi_reduction <add>, %47, %cst_21 [0] : vector<2x16x32xf32> to vector<16x32xf32>
    %c0_22 = arith.constant 0 : index
    %c0_23 = arith.constant 0 : index
    %c0_24 = arith.constant 0 : index
    %49 = vector.load %arg8[%c0_22, %c0_23, %c0_24] : memref<1x1x32xf32, #tpu.memory_space<vmem>>, vector<1x1x32xf32>
    %50 = vector.shape_cast %49 : vector<1x1x32xf32> to vector<1x32xf32>
    %51 = vector.broadcast %50 : vector<1x32xf32> to vector<16x32xf32>
    %52 = arith.addf %48, %51 : vector<16x32xf32>
    %53 = arith.addf %52, %3 : vector<16x32xf32>
    %c0_25 = arith.constant 0 : index
    %c0_26 = arith.constant 0 : index
    %c0_27 = arith.constant 0 : index
    %54 = vector.load %arg9[%c0_25, %c0_26, %c0_27] : memref<1x1x32xf32, #tpu.memory_space<vmem>>, vector<1x1x32xf32>
    %55 = vector.shape_cast %54 : vector<1x1x32xf32> to vector<1x32xf32>
    %c0_28 = arith.constant 0 : index
    %c0_29 = arith.constant 0 : index
    %c0_30 = arith.constant 0 : index
    %56 = vector.load %arg10[%c0_28, %c0_29, %c0_30] : memref<1x1x32xf32, #tpu.memory_space<vmem>>, vector<1x1x32xf32>
    %57 = vector.shape_cast %56 : vector<1x1x32xf32> to vector<1x32xf32>
    %cst_31 = arith.constant dense<0.000000e+00> : vector<16xf32>
    %58 = vector.multi_reduction <add>, %53, %cst_31 [1] : vector<16x32xf32> to vector<16xf32>
    %59 = vector.shape_cast %58 : vector<16xf32> to vector<16x1xf32>
    %cst_32 = arith.constant 3.200000e+01 : f32
    %60 = vector.broadcast %cst_32 : f32 to vector<16x1xf32>
    %61 = arith.divf %59, %60 : vector<16x1xf32>
    %62 = vector.broadcast %61 : vector<16x1xf32> to vector<16x32xf32>
    %63 = arith.subf %53, %62 : vector<16x32xf32>
    %64 = arith.mulf %63, %63 : vector<16x32xf32>
    %cst_33 = arith.constant dense<0.000000e+00> : vector<16xf32>
    %65 = vector.multi_reduction <add>, %64, %cst_33 [1] : vector<16x32xf32> to vector<16xf32>
    %66 = vector.shape_cast %65 : vector<16xf32> to vector<16x1xf32>
    %cst_34 = arith.constant 3.200000e+01 : f32
    %67 = vector.broadcast %cst_34 : f32 to vector<16x1xf32>
    %68 = arith.divf %66, %67 : vector<16x1xf32>
    %69 = vector.broadcast %61 : vector<16x1xf32> to vector<16x32xf32>
    %70 = arith.subf %53, %69 : vector<16x32xf32>
    %cst_35 = arith.constant 9.99999996E-13 : f32
    %71 = vector.broadcast %cst_35 : f32 to vector<16x1xf32>
    %72 = arith.addf %68, %71 : vector<16x1xf32>
    %73 = math.rsqrt %72 : vector<16x1xf32>
    %74 = vector.broadcast %73 : vector<16x1xf32> to vector<16x32xf32>
    %75 = arith.mulf %70, %74 : vector<16x32xf32>
    %76 = vector.broadcast %55 : vector<1x32xf32> to vector<16x32xf32>
    %77 = arith.mulf %75, %76 : vector<16x32xf32>
    %78 = vector.broadcast %57 : vector<1x32xf32> to vector<16x32xf32>
    %79 = arith.addf %77, %78 : vector<16x32xf32>
    %80 = arith.truncf %79 : vector<16x32xf32> to vector<16x32xbf16>
    %c0_36 = arith.constant 0 : index
    %c0_37 = arith.constant 0 : index
    %c0_38 = arith.constant 0 : index
    %81 = vector.load %arg11[%c0_36, %c0_37, %c0_38] : memref<1x32x64xbf16, #tpu.memory_space<vmem>>, vector<1x32x64xbf16>
    %82 = vector.shape_cast %81 : vector<1x32x64xbf16> to vector<32x64xbf16>
    %cst_39 = arith.constant dense<0.000000e+00> : vector<16x64xf32>
    %83 = tpu.matmul %80, %82, %cst_39 {dimension_numbers = #tpu.dot_dimension_numbers<[1], [0], [0], [1], [0, 0, 1, 1], [], []>} : vector<16x32xbf16>, vector<32x64xbf16>, vector<16x64xf32> -> vector<16x64xf32>
    %c0_40 = arith.constant 0 : index
    %c0_41 = arith.constant 0 : index
    %c0_42 = arith.constant 0 : index
    %84 = vector.load %arg12[%c0_40, %c0_41, %c0_42] : memref<1x1x64xf32, #tpu.memory_space<vmem>>, vector<1x1x64xf32>
    %85 = vector.shape_cast %84 : vector<1x1x64xf32> to vector<1x64xf32>
    %86 = vector.broadcast %85 : vector<1x64xf32> to vector<16x64xf32>
    %87 = arith.addf %83, %86 : vector<16x64xf32>
    %cst_43 = arith.constant 5.000000e-01 : f32
    %88 = vector.broadcast %cst_43 : f32 to vector<16x64xf32>
    %89 = arith.mulf %88, %87 : vector<16x64xf32>
    %cst_44 = arith.constant 4.471500e-02 : f32
    %90 = vector.broadcast %cst_44 : f32 to vector<16x64xf32>
    %91 = arith.mulf %90, %87 : vector<16x64xf32>
    %92 = arith.mulf %91, %87 : vector<16x64xf32>
    %93 = arith.mulf %92, %87 : vector<16x64xf32>
    %94 = arith.addf %87, %93 : vector<16x64xf32>
    %cst_45 = arith.constant 0.797884583 : f32
    %95 = vector.broadcast %cst_45 : f32 to vector<16x64xf32>
    %96 = arith.mulf %95, %94 : vector<16x64xf32>
    %97 = math.tanh %96 : vector<16x64xf32>
    %cst_46 = arith.constant 1.000000e+00 : f32
    %98 = vector.broadcast %cst_46 : f32 to vector<16x64xf32>
    %99 = arith.addf %98, %97 : vector<16x64xf32>
    %100 = arith.mulf %89, %99 : vector<16x64xf32>
    %101 = arith.truncf %100 : vector<16x64xf32> to vector<16x64xbf16>
    %c0_47 = arith.constant 0 : index
    %c0_48 = arith.constant 0 : index
    %c0_49 = arith.constant 0 : index
    %102 = vector.load %arg13[%c0_47, %c0_48, %c0_49] : memref<1x64x32xbf16, #tpu.memory_space<vmem>>, vector<1x64x32xbf16>
    %103 = vector.shape_cast %102 : vector<1x64x32xbf16> to vector<64x32xbf16>
    %cst_50 = arith.constant dense<0.000000e+00> : vector<16x32xf32>
    %104 = tpu.matmul %101, %103, %cst_50 {dimension_numbers = #tpu.dot_dimension_numbers<[1], [0], [0], [1], [0, 0, 1, 1], [], []>} : vector<16x64xbf16>, vector<64x32xbf16>, vector<16x32xf32> -> vector<16x32xf32>
    %c0_51 = arith.constant 0 : index
    %c0_52 = arith.constant 0 : index
    %c0_53 = arith.constant 0 : index
    %105 = vector.load %arg14[%c0_51, %c0_52, %c0_53] : memref<1x1x32xf32, #tpu.memory_space<vmem>>, vector<1x1x32xf32>
    %106 = vector.shape_cast %105 : vector<1x1x32xf32> to vector<1x32xf32>
    %107 = vector.broadcast %106 : vector<1x32xf32> to vector<16x32xf32>
    %108 = arith.addf %104, %107 : vector<16x32xf32>
    %109 = arith.addf %108, %79 : vector<16x32xf32>
    %c0_54 = arith.constant 0 : index
    %c0_55 = arith.constant 0 : index
    %c0_56 = arith.constant 0 : index
    %110 = vector.load %arg15[%c0_54, %c0_55, %c0_56] : memref<1x1x32xf32, #tpu.memory_space<vmem>>, vector<1x1x32xf32>
    %111 = vector.shape_cast %110 : vector<1x1x32xf32> to vector<1x32xf32>
    %c0_57 = arith.constant 0 : index
    %c0_58 = arith.constant 0 : index
    %c0_59 = arith.constant 0 : index
    %112 = vector.load %arg16[%c0_57, %c0_58, %c0_59] : memref<1x1x32xf32, #tpu.memory_space<vmem>>, vector<1x1x32xf32>
    %113 = vector.shape_cast %112 : vector<1x1x32xf32> to vector<1x32xf32>
    %cst_60 = arith.constant dense<0.000000e+00> : vector<16xf32>
    %114 = vector.multi_reduction <add>, %109, %cst_60 [1] : vector<16x32xf32> to vector<16xf32>
    %115 = vector.shape_cast %114 : vector<16xf32> to vector<16x1xf32>
    %cst_61 = arith.constant 3.200000e+01 : f32
    %116 = vector.broadcast %cst_61 : f32 to vector<16x1xf32>
    %117 = arith.divf %115, %116 : vector<16x1xf32>
    %118 = vector.broadcast %117 : vector<16x1xf32> to vector<16x32xf32>
    %119 = arith.subf %109, %118 : vector<16x32xf32>
    %120 = arith.mulf %119, %119 : vector<16x32xf32>
    %cst_62 = arith.constant dense<0.000000e+00> : vector<16xf32>
    %121 = vector.multi_reduction <add>, %120, %cst_62 [1] : vector<16x32xf32> to vector<16xf32>
    %122 = vector.shape_cast %121 : vector<16xf32> to vector<16x1xf32>
    %cst_63 = arith.constant 3.200000e+01 : f32
    %123 = vector.broadcast %cst_63 : f32 to vector<16x1xf32>
    %124 = arith.divf %122, %123 : vector<16x1xf32>
    %125 = vector.broadcast %117 : vector<16x1xf32> to vector<16x32xf32>
    %126 = arith.subf %109, %125 : vector<16x32xf32>
    %cst_64 = arith.constant 9.99999996E-13 : f32
    %127 = vector.broadcast %cst_64 : f32 to vector<16x1xf32>
    %128 = arith.addf %124, %127 : vector<16x1xf32>
    %129 = math.rsqrt %128 : vector<16x1xf32>
    %130 = vector.broadcast %129 : vector<16x1xf32> to vector<16x32xf32>
    %131 = arith.mulf %126, %130 : vector<16x32xf32>
    %132 = vector.broadcast %111 : vector<1x32xf32> to vector<16x32xf32>
    %133 = arith.mulf %131, %132 : vector<16x32xf32>
    %134 = vector.broadcast %113 : vector<1x32xf32> to vector<16x32xf32>
    %135 = arith.addf %133, %134 : vector<16x32xf32>
    %c0_65 = arith.constant 0 : index
    %c0_66 = arith.constant 0 : index
    %136 = vector.load %arg22[%c0_65, %c0_66] : memref<16x32xf32, #tpu.memory_space<vmem>>, vector<16x32xf32>
    tpu.vector_store %arg22[%c0_65, %c0_66], %135 {strides = array<i32>} : memref<16x32xf32, #tpu.memory_space<vmem>>, vector<16x32xf32>,
    %c1_i32 = arith.constant 1 : i32
    %137 = arith.cmpi eq, %arg0, %c1_i32 : i32
    %138 = arith.extui %137 : i1 to i32
    %c0_i32_67 = arith.constant 0 : i32
    %139 = arith.cmpi ne, %138, %c0_i32_67 : i32
    scf.if %139 {
      %140 = vector.shape_cast %135 : vector<16x32xf32> to vector<2x8x32xf32>
      %141 = vector.extract_strided_slice %140 {offsets = [0, 0, 0], sizes = [2, 1, 32], strides = [1, 1, 1]} : vector<2x8x32xf32> to vector<2x1x32xf32>
      %142 = vector.shape_cast %141 : vector<2x1x32xf32> to vector<2x32xf32>
      %143 = arith.truncf %142 : vector<2x32xf32> to vector<2x32xbf16>
      %c0_68 = arith.constant 0 : index
      %c0_69 = arith.constant 0 : index
      %144 = vector.load %arg17[%c0_68, %c0_69] : memref<32x32xbf16, #tpu.memory_space<vmem>>, vector<32x32xbf16>
      %cst_70 = arith.constant dense<0.000000e+00> : vector<2x32xf32>
      %145 = tpu.matmul %143, %144, %cst_70 {dimension_numbers = #tpu.dot_dimension_numbers<[1], [0], [0], [1], [0, 0, 1, 1], [], []>} : vector<2x32xbf16>, vector<32x32xbf16>, vector<2x32xf32> -> vector<2x32xf32>
      %c0_71 = arith.constant 0 : index
      %c0_72 = arith.constant 0 : index
      %146 = vector.load %arg18[%c0_71, %c0_72] : memref<1x32xf32, #tpu.memory_space<vmem>>, vector<1x32xf32>
      %147 = vector.broadcast %146 : vector<1x32xf32> to vector<2x32xf32>
      %148 = arith.addf %145, %147 : vector<2x32xf32>
      %149 = math.tanh %148 : vector<2x32xf32>
      %150 = arith.truncf %149 : vector<2x32xf32> to vector<2x32xbf16>
      %c0_73 = arith.constant 0 : index
      %c0_74 = arith.constant 0 : index
      %151 = vector.load %arg19[%c0_73, %c0_74] : memref<32x4xbf16, #tpu.memory_space<vmem>>, vector<32x4xbf16>
      %cst_75 = arith.constant dense<0.000000e+00> : vector<2x4xf32>
      %152 = tpu.matmul %150, %151, %cst_75 {dimension_numbers = #tpu.dot_dimension_numbers<[1], [0], [0], [1], [0, 0, 1, 1], [], []>} : vector<2x32xbf16>, vector<32x4xbf16>, vector<2x4xf32> -> vector<2x4xf32>
      %c0_76 = arith.constant 0 : index
      %c0_77 = arith.constant 0 : index
      %153 = vector.load %arg20[%c0_76, %c0_77] : memref<1x4xf32, #tpu.memory_space<vmem>>, vector<1x4xf32>
      %154 = vector.broadcast %153 : vector<1x4xf32> to vector<2x4xf32>
      %155 = arith.addf %152, %154 : vector<2x4xf32>
      %cst_78 = arith.constant dense<0xFF800000> : vector<2xf32>
      %156 = vector.multi_reduction <maximumf>, %155, %cst_78 [1] : vector<2x4xf32> to vector<2xf32>
      %157 = vector.shape_cast %156 : vector<2xf32> to vector<2x1xf32>
      %158 = vector.broadcast %157 : vector<2x1xf32> to vector<2x4xf32>
      %159 = arith.subf %155, %158 : vector<2x4xf32>
      %160 = math.exp %159 : vector<2x4xf32>
      %cst_79 = arith.constant dense<0.000000e+00> : vector<2xf32>
      %161 = vector.multi_reduction <add>, %160, %cst_79 [1] : vector<2x4xf32> to vector<2xf32>
      %162 = vector.shape_cast %161 : vector<2xf32> to vector<2x1xf32>
      %163 = vector.broadcast %162 : vector<2x1xf32> to vector<2x4xf32>
      %164 = arith.divf %160, %163 : vector<2x4xf32>
      %c0_80 = arith.constant 0 : index
      %c0_81 = arith.constant 0 : index
      %165 = vector.load %arg21[%c0_80, %c0_81] : memref<2x4xf32, #tpu.memory_space<vmem>>, vector<2x4xf32>
      tpu.vector_store %arg21[%c0_80, %c0_81], %164 {strides = array<i32>} : memref<2x4xf32, #tpu.memory_space<vmem>>, vector<2x4xf32>,
    } else {
    }
    return
  }
  func.func @transform_0(%arg0: i32) -> (i32, i32) {
    %c0_i32 = arith.constant 0 : i32
    %c0_i32_0 = arith.constant 0 : i32
    %c0_i32_1 = arith.constant 0 : i32
    return %c0_i32, %c0_i32_0 : i32, i32
  }
  func.func @transform_1(%arg0: i32) -> (i32, i32, i32) {
    %c0_i32 = arith.constant 0 : i32
    %c0_i32_0 = arith.constant 0 : i32
    %c0_i32_1 = arith.constant 0 : i32
    %c0_i32_2 = arith.constant 0 : i32
    return %c0_i32, %c0_i32_0, %c0_i32_1 : i32, i32, i32
  }
  func.func @transform_2(%arg0: i32) -> (i32, i32) {
    %c0_i32 = arith.constant 0 : i32
    %c0_i32_0 = arith.constant 0 : i32
    %c0_i32_1 = arith.constant 0 : i32
    return %c0_i32, %c0_i32_0 : i32, i32
  }
  func.func @transform_3(%arg0: i32) -> (i32, i32) {
    %c0_i32 = arith.constant 0 : i32
    %c0_i32_0 = arith.constant 0 : i32
    %c0_i32_1 = arith.constant 0 : i32
    return %c0_i32, %c0_i32_0 : i32, i32
  }
  func.func @transform_4(%arg0: i32) -> (i32, i32, i32) {
    %c0_i32 = arith.constant 0 : i32
    %c0_i32_0 = arith.constant 0 : i32
    %c0_i32_1 = arith.constant 0 : i32
    return %arg0, %c0_i32, %c0_i32_0 : i32, i32, i32
  }
  func.func @transform_5(%arg0: i32) -> (i32, i32, i32) {
    %c0_i32 = arith.constant 0 : i32
    %c0_i32_0 = arith.constant 0 : i32
    %c0_i32_1 = arith.constant 0 : i32
    return %arg0, %c0_i32, %c0_i32_0 : i32, i32, i32
  }
  func.func @transform_6(%arg0: i32) -> (i32, i32, i32, i32) {
    %c0_i32 = arith.constant 0 : i32
    %c0_i32_0 = arith.constant 0 : i32
    %c0_i32_1 = arith.constant 0 : i32
    %c0_i32_2 = arith.constant 0 : i32
    return %arg0, %c0_i32, %c0_i32_0, %c0_i32_1 : i32, i32, i32, i32
  }
  func.func @transform_7(%arg0: i32) -> (i32, i32, i32) {
    %c0_i32 = arith.constant 0 : i32
    %c0_i32_0 = arith.constant 0 : i32
    %c0_i32_1 = arith.constant 0 : i32
    return %arg0, %c0_i32, %c0_i32_0 : i32, i32, i32
  }
  func.func @transform_8(%arg0: i32) -> (i32, i32, i32) {
    %c0_i32 = arith.constant 0 : i32
    %c0_i32_0 = arith.constant 0 : i32
    %c0_i32_1 = arith.constant 0 : i32
    return %arg0, %c0_i32, %c0_i32_0 : i32, i32, i32
  }
  func.func @transform_9(%arg0: i32) -> (i32, i32, i32) {
    %c0_i32 = arith.constant 0 : i32
    %c0_i32_0 = arith.constant 0 : i32
    %c0_i32_1 = arith.constant 0 : i32
    return %arg0, %c0_i32, %c0_i32_0 : i32, i32, i32
  }
  func.func @transform_10(%arg0: i32) -> (i32, i32, i32) {
    %c0_i32 = arith.constant 0 : i32
    %c0_i32_0 = arith.constant 0 : i32
    %c0_i32_1 = arith.constant 0 : i32
    return %arg0, %c0_i32, %c0_i32_0 : i32, i32, i32
  }
  func.func @transform_11(%arg0: i32) -> (i32, i32, i32) {
    %c0_i32 = arith.constant 0 : i32
    %c0_i32_0 = arith.constant 0 : i32
    %c0_i32_1 = arith.constant 0 : i32
    return %arg0, %c0_i32, %c0_i32_0 : i32, i32, i32
  }
  func.func @transform_12(%arg0: i32) -> (i32, i32, i32) {
    %c0_i32 = arith.constant 0 : i32
    %c0_i32_0 = arith.constant 0 : i32
    %c0_i32_1 = arith.constant 0 : i32
    return %arg0, %c0_i32, %c0_i32_0 : i32, i32, i32
  }
  func.func @transform_13(%arg0: i32) -> (i32, i32, i32) {
    %c0_i32 = arith.constant 0 : i32
    %c0_i32_0 = arith.constant 0 : i32
    %c0_i32_1 = arith.constant 0 : i32
    return %arg0, %c0_i32, %c0_i32_0 : i32, i32, i32
  }
  func.func @transform_14(%arg0: i32) -> (i32, i32, i32) {
    %c0_i32 = arith.constant 0 : i32
    %c0_i32_0 = arith.constant 0 : i32
    %c0_i32_1 = arith.constant 0 : i32
    return %arg0, %c0_i32, %c0_i32_0 : i32, i32, i32
  }
  func.func @transform_15(%arg0: i32) -> (i32, i32, i32) {
    %c0_i32 = arith.constant 0 : i32
    %c0_i32_0 = arith.constant 0 : i32
    %c0_i32_1 = arith.constant 0 : i32
    return %arg0, %c0_i32, %c0_i32_0 : i32, i32, i32
  }
  func.func @transform_16(%arg0: i32) -> (i32, i32) {
    %c0_i32 = arith.constant 0 : i32
    %c0_i32_0 = arith.constant 0 : i32
    %c0_i32_1 = arith.constant 0 : i32
    return %c0_i32, %c0_i32_0 : i32, i32
  }
  func.func @transform_17(%arg0: i32) -> (i32, i32) {
    %c0_i32 = arith.constant 0 : i32
    %c0_i32_0 = arith.constant 0 : i32
    %c0_i32_1 = arith.constant 0 : i32
    return %c0_i32, %c0_i32_0 : i32, i32
  }
  func.func @transform_18(%arg0: i32) -> (i32, i32) {
    %c0_i32 = arith.constant 0 : i32
    %c0_i32_0 = arith.constant 0 : i32
    %c0_i32_1 = arith.constant 0 : i32
    return %c0_i32, %c0_i32_0 : i32, i32
  }
  func.func @transform_19(%arg0: i32) -> (i32, i32) {
    %c0_i32 = arith.constant 0 : i32
    %c0_i32_0 = arith.constant 0 : i32
    %c0_i32_1 = arith.constant 0 : i32
    return %c0_i32, %c0_i32_0 : i32, i32
  }
  func.func @transform_20(%arg0: i32) -> (i32, i32) {
    %c0_i32 = arith.constant 0 : i32
    %c0_i32_0 = arith.constant 0 : i32
    %c0_i32_1 = arith.constant 0 : i32
    return %c0_i32, %c0_i32_0 : i32, i32
  }
}

</mosaic_0001>

<llo_original>
// kernel: bert_classifier_forward.1
$region0: #{bert_classifier_forward.1}
  #allocation0 [shape = 'u32[]', space=smem, size = 0x4, offset = 0x4, fixed_abs, tag = 'smem constant byte address 0x4 - core index']
  #allocation1 [shape = 'u32[144,128]{1,0:T(1,128)}', space=vmem, size = 0x12000, scoped, tag = 'internal scratch']
  #allocation2 [shape = 'f32[16,32]{1,0:T(8,128)}', space=vmem, size = 0x2000, scoped, tag = 'scratch operand']
  %s0 = inlined_call_operand.vmem [shape: f32[16,32], index: 0, kind: input, shape index: {}]
  %s1 = inlined_call_operand.vmem [shape: f32[4,1,8], index: 1, kind: input, shape index: {}]
  %s2 = inlined_call_operand.vmem [shape: f32[1,32], index: 2, kind: input, shape index: {}]
  %s3 = inlined_call_operand.vmem [shape: f32[1,32], index: 3, kind: input, shape index: {}]
  %s4 = inlined_call_operand.vmem [shape: bf16[2,32,96], index: 4, kind: input, shape index: {}]
  %s5 = inlined_call_operand.vmem [shape: f32[2,1,96], index: 5, kind: input, shape index: {}]
  %s6 = inlined_call_operand.vmem [shape: bf16[2,2,16,32], index: 6, kind: input, shape index: {}]
  %s7 = inlined_call_operand.vmem [shape: f32[2,1,32], index: 7, kind: input, shape index: {}]
  %s8 = inlined_call_operand.vmem [shape: f32[2,1,32], index: 8, kind: input, shape index: {}]
  %s9 = inlined_call_operand.vmem [shape: f32[2,1,32], index: 9, kind: input, shape index: {}]
  %s10 = inlined_call_operand.vmem [shape: bf16[2,32,64], index: 10, kind: input, shape index: {}]
  %s11 = inlined_call_operand.vmem [shape: f32[2,1,64], index: 11, kind: input, shape index: {}]
  %s12 = inlined_call_operand.vmem [shape: bf16[2,64,32], index: 12, kind: input, shape index: {}]
  %s13 = inlined_call_operand.vmem [shape: f32[2,1,32], index: 13, kind: input, shape index: {}]
  %s14 = inlined_call_operand.vmem [shape: f32[2,1,32], index: 14, kind: input, shape index: {}]
  %s15 = inlined_call_operand.vmem [shape: f32[2,1,32], index: 15, kind: input, shape index: {}]
  %s16 = inlined_call_operand.vmem [shape: bf16[32,32], index: 16, kind: input, shape index: {}]
  %s17 = inlined_call_operand.vmem [shape: f32[1,32], index: 17, kind: input, shape index: {}]
  %s18 = inlined_call_operand.vmem [shape: bf16[32,4], index: 18, kind: input, shape index: {}]
  %s19 = inlined_call_operand.vmem [shape: f32[1,4], index: 19, kind: input, shape index: {}]
  %s20 = inlined_call_operand.hbm [shape: f32[2,4], index: 20, kind: output, shape index: {}]
  %s21 = sld [smem:[#allocation0]]
  $region121: #{bert_classifier_forward.1} parent=0
    _
  %s23 = ssub.s32 1, %s21
  %s24 = scalar_select 0, %s23, %s21
  $region1: #{bert_classifier_forward.1} parent=0
    #allocation3 [shape = 'u8[1024]{0}', space=vmem, size = 0x400, scoped, tag = 'output window, operand 0, single buffered']
    #allocation4 [shape = 's32[2]{0}', space=sflag, size = 0x8, scoped, tag = 'scoped memory for bert_classifier_forward.1']
    %25 = vsyncpa [#allocation4], 0
    loop: start=0, step=1, limit=4
    $region2: #{bert_classifier_forward.1} parent=1 // loop_pre_header
      _
    $region3: #{bert_classifier_forward.1} parent=1 // loop_header
      %s27 = sphi 0, %s31
      %p28 = scmp.ge.s32.totalorder %s27, 4
      %s35 = sphi 0, %s35
      %s37 = sphi 0, %s35
      %s38 = sphi 0, %s37
      %s52 = sphi 0, %s38
      %s56 = sphi 0, %s56
      %s58 = sphi 0, %s56
      %s59 = sphi 0, %s58
      %s73 = sphi 0, %s59
      %s77 = sphi 0, %s77
      %s79 = sphi 0, %s77
      %s80 = sphi 0, %s79
      %s94 = sphi 0, %s80
      %s98 = sphi 0, %s98
      %s100 = sphi 0, %s98
      %s101 = sphi 0, %s100
      %s115 = sphi 0, %s101
      %s121 = sphi 0, %s123
      %s124 = sphi 0, %s121
      %s125 = sphi 0, %s124
      %s141 = sphi 0, %s125
      %s147 = sphi 0, %s149
      %s150 = sphi 0, %s147
      %s151 = sphi 0, %s150
      %s167 = sphi 0, %s151
      %s173 = sphi 0, %s175
      %s176 = sphi 0, %s173
      %s177 = sphi 0, %s176
      %s193 = sphi 0, %s177
      %s199 = sphi 0, %s201
      %s202 = sphi 0, %s199
      %s203 = sphi 0, %s202
      %s219 = sphi 0, %s203
      %s225 = sphi 0, %s227
      %s228 = sphi 0, %s225
      %s229 = sphi 0, %s228
      %s245 = sphi 0, %s229
      %s251 = sphi 0, %s253
      %s254 = sphi 0, %s251
      %s255 = sphi 0, %s254
      %s271 = sphi 0, %s255
      %s277 = sphi 0, %s279
      %s280 = sphi 0, %s277
      %s281 = sphi 0, %s280
      %s297 = sphi 0, %s281
      %s303 = sphi 0, %s305
      %s306 = sphi 0, %s303
      %s307 = sphi 0, %s306
      %s323 = sphi 0, %s307
      %s329 = sphi 0, %s331
      %s332 = sphi 0, %s329
      %s333 = sphi 0, %s332
      %s349 = sphi 0, %s333
      %s355 = sphi 0, %s357
      %s358 = sphi 0, %s355
      %s359 = sphi 0, %s358
      %s375 = sphi 0, %s359
      %s381 = sphi 0, %s383
      %s384 = sphi 0, %s381
      %s385 = sphi 0, %s384
      %s401 = sphi 0, %s385
      %s407 = sphi 0, %s409
      %s410 = sphi 0, %s407
      %s411 = sphi 0, %s410
      %s427 = sphi 0, %s411
      %s431 = sphi 0, %s431
      %s433 = sphi 0, %s431
      %s434 = sphi 0, %s433
      %s448 = sphi 0, %s434
      %s452 = sphi 0, %s452
      %s454 = sphi 0, %s452
      %s455 = sphi 0, %s454
      %s469 = sphi 0, %s455
      %s473 = sphi 0, %s473
      %s475 = sphi 0, %s473
      %s476 = sphi 0, %s475
      %s490 = sphi 0, %s476
      %s494 = sphi 0, %s494
      %s496 = sphi 0, %s494
      %s497 = sphi 0, %s496
      %s511 = sphi 0, %s497
      %s515 = sphi 0, %s515
      %s517 = sphi 0, %s515
      %s518 = sphi 0, %s517
      %s532 = sphi 0, %s518
    $region4: #{bert_classifier_forward.1} parent=1 // loop_header_branch
      %30 = sbr.rel (%p28) target = $region8
    $region5: #{bert_classifier_forward.1} parent=1 // loop_body
      %s32 = ssub.s32 %s27, 1
      %s33 = ssub.s32 %s27, 2
      %s34 = sadd.s32 %s27, 1
      %s36 = sadd.s32 %s35, 1
      %p39 = scmp.eq.s32.totalorder %s27, 1
      %p40 = scmp.ne.s32.totalorder %s35, %s37
      %p41 = scmp.eq.s32.totalorder %s27, 0
      %p42 = por %p40, %p41
      %p43 = scmp.ne.s32.totalorder %s35, %s37
      %p44 = scmp.eq.s32.totalorder %s32, 1
      %p45 = por %p43, %p44
      %p46 = scmp.ne.s32.totalorder %s37, %s38
      %p47 = scmp.eq.s32.totalorder %s32, 0
      %p48 = por %p46, %p47
      %p49 = scmp.ne.s32.totalorder %s37, %s38
      %p50 = scmp.eq.s32.totalorder %s33, 1
      %p51 = por %p49, %p50
      %p53 = scmp.ne.s32.totalorder %s38, %s52
      %p54 = scmp.eq.s32.totalorder %s33, 0
      %p55 = por %p53, %p54
      %s57 = sadd.s32 %s56, 1
      %p60 = scmp.eq.s32.totalorder %s27, 1
      %p61 = scmp.ne.s32.totalorder %s56, %s58
      %p62 = scmp.eq.s32.totalorder %s27, 0
      %p63 = por %p61, %p62
      %p64 = scmp.ne.s32.totalorder %s56, %s58
      %p65 = scmp.eq.s32.totalorder %s32, 1
      %p66 = por %p64, %p65
      %p67 = scmp.ne.s32.totalorder %s58, %s59
      %p68 = scmp.eq.s32.totalorder %s32, 0
      %p69 = por %p67, %p68
      %p70 = scmp.ne.s32.totalorder %s58, %s59
      %p71 = scmp.eq.s32.totalorder %s33, 1
      %p72 = por %p70, %p71
      %p74 = scmp.ne.s32.totalorder %s59, %s73
      %p75 = scmp.eq.s32.totalorder %s33, 0
      %p76 = por %p74, %p75
      %s78 = sadd.s32 %s77, 1
      %p81 = scmp.eq.s32.totalorder %s27, 1
      %p82 = scmp.ne.s32.totalorder %s77, %s79
      %p83 = scmp.eq.s32.totalorder %s27, 0
      %p84 = por %p82, %p83
      %p85 = scmp.ne.s32.totalorder %s77, %s79
      %p86 = scmp.eq.s32.totalorder %s32, 1
      %p87 = por %p85, %p86
      %p88 = scmp.ne.s32.totalorder %s79, %s80
      %p89 = scmp.eq.s32.totalorder %s32, 0
      %p90 = por %p88, %p89
      %p91 = scmp.ne.s32.totalorder %s79, %s80
      %p92 = scmp.eq.s32.totalorder %s33, 1
      %p93 = por %p91, %p92
      %p95 = scmp.ne.s32.totalorder %s80, %s94
      %p96 = scmp.eq.s32.totalorder %s33, 0
      %p97 = por %p95, %p96
      %s99 = sadd.s32 %s98, 1
      %p102 = scmp.eq.s32.totalorder %s27, 1
      %p103 = scmp.ne.s32.totalorder %s98, %s100
      %p104 = scmp.eq.s32.totalorder %s27, 0
      %p105 = por %p103, %p104
      %p106 = scmp.ne.s32.totalorder %s98, %s100
      %p107 = scmp.eq.s32.totalorder %s32, 1
      %p108 = por %p106, %p107
      %p109 = scmp.ne.s32.totalorder %s100, %s101
      %p110 = scmp.eq.s32.totalorder %s32, 0
      %p111 = por %p109, %p110
      %p112 = scmp.ne.s32.totalorder %s100, %s101
      %p113 = scmp.eq.s32.totalorder %s33, 1
      %p114 = por %p112, %p113
      %p116 = scmp.ne.s32.totalorder %s101, %s115
      %p117 = scmp.eq.s32.totalorder %s33, 0
      %p118 = por %p116, %p117
      %s119 = ssub.s32 %s27, %s34
      %p120 = scmp.eq.s32.totalorder %s119, 0
      %s122 = sadd.s32 %s121, 1
      %s123 = scalar_select %p120, %s121, %s122
      %p126 = pneg %p120
      %p127 = scmp.eq.s32.totalorder %s27, 1
      %p128 = por %p126, %p127
      %p129 = scmp.ne.s32.totalorder %s121, %s124
      %p130 = scmp.eq.s32.totalorder %s27, 0
      %p131 = por %p129, %p130
      %p132 = scmp.ne.s32.totalorder %s121, %s124
      %p133 = scmp.eq.s32.totalorder %s32, 1
      %p134 = por %p132, %p133
      %p135 = scmp.ne.s32.totalorder %s124, %s125
      %p136 = scmp.eq.s32.totalorder %s32, 0
      %p137 = por %p135, %p136
      %p138 = scmp.ne.s32.totalorder %s124, %s125
      %p139 = scmp.eq.s32.totalorder %s33, 1
      %p140 = por %p138, %p139
      %p142 = scmp.ne.s32.totalorder %s125, %s141
      %p143 = scmp.eq.s32.totalorder %s33, 0
      %p144 = por %p142, %p143
      %s145 = ssub.s32 %s27, %s34
      %p146 = scmp.eq.s32.totalorder %s145, 0
      %s148 = sadd.s32 %s147, 1
      %s149 = scalar_select %p146, %s147, %s148
      %p152 = pneg %p146
      %p153 = scmp.eq.s32.totalorder %s27, 1
      %p154 = por %p152, %p153
      %p155 = scmp.ne.s32.totalorder %s147, %s150
      %p156 = scmp.eq.s32.totalorder %s27, 0
      %p157 = por %p155, %p156
      %p158 = scmp.ne.s32.totalorder %s147, %s150
      %p159 = scmp.eq.s32.totalorder %s32, 1
      %p160 = por %p158, %p159
      %p161 = scmp.ne.s32.totalorder %s150, %s151
      %p162 = scmp.eq.s32.totalorder %s32, 0
      %p163 = por %p161, %p162
      %p164 = scmp.ne.s32.totalorder %s150, %s151
      %p165 = scmp.eq.s32.totalorder %s33, 1
      %p166 = por %p164, %p165
      %p168 = scmp.ne.s32.totalorder %s151, %s167
      %p169 = scmp.eq.s32.totalorder %s33, 0
      %p170 = por %p168, %p169
      %s171 = ssub.s32 %s27, %s34
      %p172 = scmp.eq.s32.totalorder %s171, 0
      %s174 = sadd.s32 %s173, 1
      %s175 = scalar_select %p172, %s173, %s174
      %p178 = pneg %p172
      %p179 = scmp.eq.s32.totalorder %s27, 1
      %p180 = por %p178, %p179
      %p181 = scmp.ne.s32.totalorder %s173, %s176
      %p182 = scmp.eq.s32.totalorder %s27, 0
      %p183 = por %p181, %p182
      %p184 = scmp.ne.s32.totalorder %s173, %s176
      %p185 = scmp.eq.s32.totalorder %s32, 1
      %p186 = por %p184, %p185
      %p187 = scmp.ne.s32.totalorder %s176, %s177
      %p188 = scmp.eq.s32.totalorder %s32, 0
      %p189 = por %p187, %p188
      %p190 = scmp.ne.s32.totalorder %s176, %s177
      %p191 = scmp.eq.s32.totalorder %s33, 1
      %p192 = por %p190, %p191
      %p194 = scmp.ne.s32.totalorder %s177, %s193
      %p195 = scmp.eq.s32.totalorder %s33, 0
      %p196 = por %p194, %p195
      %s197 = ssub.s32 %s27, %s34
      %p198 = scmp.eq.s32.totalorder %s197, 0
      %s200 = sadd.s32 %s199, 1
      %s201 = scalar_select %p198, %s199, %s200
      %p204 = pneg %p198
      %p205 = scmp.eq.s32.totalorder %s27, 1
      %p206 = por %p204, %p205
      %p207 = scmp.ne.s32.totalorder %s199, %s202
      %p208 = scmp.eq.s32.totalorder %s27, 0
      %p209 = por %p207, %p208
      %p210 = scmp.ne.s32.totalorder %s199, %s202
      %p211 = scmp.eq.s32.totalorder %s32, 1
      %p212 = por %p210, %p211
      %p213 = scmp.ne.s32.totalorder %s202, %s203
      %p214 = scmp.eq.s32.totalorder %s32, 0
      %p215 = por %p213, %p214
      %p216 = scmp.ne.s32.totalorder %s202, %s203
      %p217 = scmp.eq.s32.totalorder %s33, 1
      %p218 = por %p216, %p217
      %p220 = scmp.ne.s32.totalorder %s203, %s219
      %p221 = scmp.eq.s32.totalorder %s33, 0
      %p222 = por %p220, %p221
      %s223 = ssub.s32 %s27, %s34
      %p224 = scmp.eq.s32.totalorder %s223, 0
      %s226 = sadd.s32 %s225, 1
      %s227 = scalar_select %p224, %s225, %s226
      %p230 = pneg %p224
      %p231 = scmp.eq.s32.totalorder %s27, 1
      %p232 = por %p230, %p231
      %p233 = scmp.ne.s32.totalorder %s225, %s228
      %p234 = scmp.eq.s32.totalorder %s27, 0
      %p235 = por %p233, %p234
      %p236 = scmp.ne.s32.totalorder %s225, %s228
      %p237 = scmp.eq.s32.totalorder %s32, 1
      %p238 = por %p236, %p237
      %p239 = scmp.ne.s32.totalorder %s228, %s229
      %p240 = scmp.eq.s32.totalorder %s32, 0
      %p241 = por %p239, %p240
      %p242 = scmp.ne.s32.totalorder %s228, %s229
      %p243 = scmp.eq.s32.totalorder %s33, 1
      %p244 = por %p242, %p243
      %p246 = scmp.ne.s32.totalorder %s229, %s245
      %p247 = scmp.eq.s32.totalorder %s33, 0
      %p248 = por %p246, %p247
      %s249 = ssub.s32 %s27, %s34
      %p250 = scmp.eq.s32.totalorder %s249, 0
      %s252 = sadd.s32 %s251, 1
      %s253 = scalar_select %p250, %s251, %s252
      %p256 = pneg %p250
      %p257 = scmp.eq.s32.totalorder %s27, 1
      %p258 = por %p256, %p257
      %p259 = scmp.ne.s32.totalorder %s251, %s254
      %p260 = scmp.eq.s32.totalorder %s27, 0
      %p261 = por %p259, %p260
      %p262 = scmp.ne.s32.totalorder %s251, %s254
      %p263 = scmp.eq.s32.totalorder %s32, 1
      %p264 = por %p262, %p263
      %p265 = scmp.ne.s32.totalorder %s254, %s255
      %p266 = scmp.eq.s32.totalorder %s32, 0
      %p267 = por %p265, %p266
      %p268 = scmp.ne.s32.totalorder %s254, %s255
      %p269 = scmp.eq.s32.totalorder %s33, 1
      %p270 = por %p268, %p269
      %p272 = scmp.ne.s32.totalorder %s255, %s271
      %p273 = scmp.eq.s32.totalorder %s33, 0
      %p274 = por %p272, %p273
      %s275 = ssub.s32 %s27, %s34
      %p276 = scmp.eq.s32.totalorder %s275, 0
      %s278 = sadd.s32 %s277, 1
      %s279 = scalar_select %p276, %s277, %s278
      %p282 = pneg %p276
      %p283 = scmp.eq.s32.totalorder %s27, 1
      %p284 = por %p282, %p283
      %p285 = scmp.ne.s32.totalorder %s277, %s280
      %p286 = scmp.eq.s32.totalorder %s27, 0
      %p287 = por %p285, %p286
      %p288 = scmp.ne.s32.totalorder %s277, %s280
      %p289 = scmp.eq.s32.totalorder %s32, 1
      %p290 = por %p288, %p289
      %p291 = scmp.ne.s32.totalorder %s280, %s281
      %p292 = scmp.eq.s32.totalorder %s32, 0
      %p293 = por %p291, %p292
      %p294 = scmp.ne.s32.totalorder %s280, %s281
      %p295 = scmp.eq.s32.totalorder %s33, 1
      %p296 = por %p294, %p295
      %p298 = scmp.ne.s32.totalorder %s281, %s297
      %p299 = scmp.eq.s32.totalorder %s33, 0
      %p300 = por %p298, %p299
      %s301 = ssub.s32 %s27, %s34
      %p302 = scmp.eq.s32.totalorder %s301, 0
      %s304 = sadd.s32 %s303, 1
      %s305 = scalar_select %p302, %s303, %s304
      %p308 = pneg %p302
      %p309 = scmp.eq.s32.totalorder %s27, 1
      %p310 = por %p308, %p309
      %p311 = scmp.ne.s32.totalorder %s303, %s306
      %p312 = scmp.eq.s32.totalorder %s27, 0
      %p313 = por %p311, %p312
      %p314 = scmp.ne.s32.totalorder %s303, %s306
      %p315 = scmp.eq.s32.totalorder %s32, 1
      %p316 = por %p314, %p315
      %p317 = scmp.ne.s32.totalorder %s306, %s307
      %p318 = scmp.eq.s32.totalorder %s32, 0
      %p319 = por %p317, %p318
      %p320 = scmp.ne.s32.totalorder %s306, %s307
      %p321 = scmp.eq.s32.totalorder %s33, 1
      %p322 = por %p320, %p321
      %p324 = scmp.ne.s32.totalorder %s307, %s323
      %p325 = scmp.eq.s32.totalorder %s33, 0
      %p326 = por %p324, %p325
      %s327 = ssub.s32 %s27, %s34
      %p328 = scmp.eq.s32.totalorder %s327, 0
      %s330 = sadd.s32 %s329, 1
      %s331 = scalar_select %p328, %s329, %s330
      %p334 = pneg %p328
      %p335 = scmp.eq.s32.totalorder %s27, 1
      %p336 = por %p334, %p335
      %p337 = scmp.ne.s32.totalorder %s329, %s332
      %p338 = scmp.eq.s32.totalorder %s27, 0
      %p339 = por %p337, %p338
      %p340 = scmp.ne.s32.totalorder %s329, %s332
      %p341 = scmp.eq.s32.totalorder %s32, 1
      %p342 = por %p340, %p341
      %p343 = scmp.ne.s32.totalorder %s332, %s333
      %p344 = scmp.eq.s32.totalorder %s32, 0
      %p345 = por %p343, %p344
      %p346 = scmp.ne.s32.totalorder %s332, %s333
      %p347 = scmp.eq.s32.totalorder %s33, 1
      %p348 = por %p346, %p347
      %p350 = scmp.ne.s32.totalorder %s333, %s349
      %p351 = scmp.eq.s32.totalorder %s33, 0
      %p352 = por %p350, %p351
      %s353 = ssub.s32 %s27, %s34
      %p354 = scmp.eq.s32.totalorder %s353, 0
      %s356 = sadd.s32 %s355, 1
      %s357 = scalar_select %p354, %s355, %s356
      %p360 = pneg %p354
      %p361 = scmp.eq.s32.totalorder %s27, 1
      %p362 = por %p360, %p361
      %p363 = scmp.ne.s32.totalorder %s355, %s358
      %p364 = scmp.eq.s32.totalorder %s27, 0
      %p365 = por %p363, %p364
      %p366 = scmp.ne.s32.totalorder %s355, %s358
      %p367 = scmp.eq.s32.totalorder %s32, 1
      %p368 = por %p366, %p367
      %p369 = scmp.ne.s32.totalorder %s358, %s359
      %p370 = scmp.eq.s32.totalorder %s32, 0
      %p371 = por %p369, %p370
      %p372 = scmp.ne.s32.totalorder %s358, %s359
      %p373 = scmp.eq.s32.totalorder %s33, 1
      %p374 = por %p372, %p373
      %p376 = scmp.ne.s32.totalorder %s359, %s375
      %p377 = scmp.eq.s32.totalorder %s33, 0
      %p378 = por %p376, %p377
      %s379 = ssub.s32 %s27, %s34
      %p380 = scmp.eq.s32.totalorder %s379, 0
      %s382 = sadd.s32 %s381, 1
      %s383 = scalar_select %p380, %s381, %s382
      %p386 = pneg %p380
      %p387 = scmp.eq.s32.totalorder %s27, 1
      %p388 = por %p386, %p387
      %p389 = scmp.ne.s32.totalorder %s381, %s384
      %p390 = scmp.eq.s32.totalorder %s27, 0
      %p391 = por %p389, %p390
      %p392 = scmp.ne.s32.totalorder %s381, %s384
      %p393 = scmp.eq.s32.totalorder %s32, 1
      %p394 = por %p392, %p393
      %p395 = scmp.ne.s32.totalorder %s384, %s385
      %p396 = scmp.eq.s32.totalorder %s32, 0
      %p397 = por %p395, %p396
      %p398 = scmp.ne.s32.totalorder %s384, %s385
      %p399 = scmp.eq.s32.totalorder %s33, 1
      %p400 = por %p398, %p399
      %p402 = scmp.ne.s32.totalorder %s385, %s401
      %p403 = scmp.eq.s32.totalorder %s33, 0
      %p404 = por %p402, %p403
      %s405 = ssub.s32 %s27, %s34
      %p406 = scmp.eq.s32.totalorder %s405, 0
      %s408 = sadd.s32 %s407, 1
      %s409 = scalar_select %p406, %s407, %s408
      %p412 = pneg %p406
      %p413 = scmp.eq.s32.totalorder %s27, 1
      %p414 = por %p412, %p413
      %p415 = scmp.ne.s32.totalorder %s407, %s410
      %p416 = scmp.eq.s32.totalorder %s27, 0
      %p417 = por %p415, %p416
      %p418 = scmp.ne.s32.totalorder %s407, %s410
      %p419 = scmp.eq.s32.totalorder %s32, 1
      %p420 = por %p418, %p419
      %p421 = scmp.ne.s32.totalorder %s410, %s411
      %p422 = scmp.eq.s32.totalorder %s32, 0
      %p423 = por %p421, %p422
      %p424 = scmp.ne.s32.totalorder %s410, %s411
      %p425 = scmp.eq.s32.totalorder %s33, 1
      %p426 = por %p424, %p425
      %p428 = scmp.ne.s32.totalorder %s411, %s427
      %p429 = scmp.eq.s32.totalorder %s33, 0
      %p430 = por %p428, %p429
      %s432 = sadd.s32 %s431, 1
      %p435 = scmp.eq.s32.totalorder %s27, 1
      %p436 = scmp.ne.s32.totalorder %s431, %s433
      %p437 = scmp.eq.s32.totalorder %s27, 0
      %p438 = por %p436, %p437
      %p439 = scmp.ne.s32.totalorder %s431, %s433
      %p440 = scmp.eq.s32.totalorder %s32, 1
      %p441 = por %p439, %p440
      %p442 = scmp.ne.s32.totalorder %s433, %s434
      %p443 = scmp.eq.s32.totalorder %s32, 0
      %p444 = por %p442, %p443
      %p445 = scmp.ne.s32.totalorder %s433, %s434
      %p446 = scmp.eq.s32.totalorder %s33, 1
      %p447 = por %p445, %p446
      %p449 = scmp.ne.s32.totalorder %s434, %s448
      %p450 = scmp.eq.s32.totalorder %s33, 0
      %p451 = por %p449, %p450
      %s453 = sadd.s32 %s452, 1
      %p456 = scmp.eq.s32.totalorder %s27, 1
      %p457 = scmp.ne.s32.totalorder %s452, %s454
      %p458 = scmp.eq.s32.totalorder %s27, 0
      %p459 = por %p457, %p458
      %p460 = scmp.ne.s32.totalorder %s452, %s454
      %p461 = scmp.eq.s32.totalorder %s32, 1
      %p462 = por %p460, %p461
      %p463 = scmp.ne.s32.totalorder %s454, %s455
      %p464 = scmp.eq.s32.totalorder %s32, 0
      %p465 = por %p463, %p464
      %p466 = scmp.ne.s32.totalorder %s454, %s455
      %p467 = scmp.eq.s32.totalorder %s33, 1
      %p468 = por %p466, %p467
      %p470 = scmp.ne.s32.totalorder %s455, %s469
      %p471 = scmp.eq.s32.totalorder %s33, 0
      %p472 = por %p470, %p471
      %s474 = sadd.s32 %s473, 1
      %p477 = scmp.eq.s32.totalorder %s27, 1
      %p478 = scmp.ne.s32.totalorder %s473, %s475
      %p479 = scmp.eq.s32.totalorder %s27, 0
      %p480 = por %p478, %p479
      %p481 = scmp.ne.s32.totalorder %s473, %s475
      %p482 = scmp.eq.s32.totalorder %s32, 1
      %p483 = por %p481, %p482
      %p484 = scmp.ne.s32.totalorder %s475, %s476
      %p485 = scmp.eq.s32.totalorder %s32, 0
      %p486 = por %p484, %p485
      %p487 = scmp.ne.s32.totalorder %s475, %s476
      %p488 = scmp.eq.s32.totalorder %s33, 1
      %p489 = por %p487, %p488
      %p491 = scmp.ne.s32.totalorder %s476, %s490
      %p492 = scmp.eq.s32.totalorder %s33, 0
      %p493 = por %p491, %p492
      %s495 = sadd.s32 %s494, 1
      %p498 = scmp.eq.s32.totalorder %s27, 1
      %p499 = scmp.ne.s32.totalorder %s494, %s496
      %p500 = scmp.eq.s32.totalorder %s27, 0
      %p501 = por %p499, %p500
      %p502 = scmp.ne.s32.totalorder %s494, %s496
      %p503 = scmp.eq.s32.totalorder %s32, 1
      %p504 = por %p502, %p503
      %p505 = scmp.ne.s32.totalorder %s496, %s497
      %p506 = scmp.eq.s32.totalorder %s32, 0
      %p507 = por %p505, %p506
      %p508 = scmp.ne.s32.totalorder %s496, %s497
      %p509 = scmp.eq.s32.totalorder %s33, 1
      %p510 = por %p508, %p509
      %p512 = scmp.ne.s32.totalorder %s497, %s511
      %p513 = scmp.eq.s32.totalorder %s33, 0
      %p514 = por %p512, %p513
      %s516 = sadd.s32 %s515, 1
      %p519 = scmp.eq.s32.totalorder %s27, 1
      %p520 = scmp.ne.s32.totalorder %s515, %s517
      %p521 = scmp.eq.s32.totalorder %s27, 0
      %p522 = por %p520, %p521
      %p523 = scmp.ne.s32.totalorder %s515, %s517
      %p524 = scmp.eq.s32.totalorder %s32, 1
      %p525 = por %p523, %p524
      %p526 = scmp.ne.s32.totalorder %s517, %s518
      %p527 = scmp.eq.s32.totalorder %s32, 0
      %p528 = por %p526, %p527
      %p529 = scmp.ne.s32.totalorder %s517, %s518
      %p530 = scmp.eq.s32.totalorder %s33, 1
      %p531 = por %p529, %p530
      %p533 = scmp.ne.s32.totalorder %s518, %s532
      %p534 = scmp.eq.s32.totalorder %s33, 0
      %p535 = por %p533, %p534
      %p536 = scmp.le.s32.totalorder 1, %s27
      %p537 = scmp.lt.s32.totalorder %s27, 3
      %p538 = pnand %p536, %p537
      %p539 = pneg %p538
      // Predicated region
      $region9: #{bert_classifier_forward.1} parent=5 // pred_check
        _
      $region10: #{bert_classifier_forward.1} parent=5 // pred_check_branch
        %541 = sbr.rel (%p538) target = $region12
      $region11: #{bert_classifier_forward.1} parent=5 // pred_region
        %s542 = ssub.s32 %s27, 1
        // Predicated region
        $region13: #{bert_classifier_forward.1} parent=11 // pred_check
          %p543 = pneg %p48
        $region14: #{bert_classifier_forward.1} parent=11 // pred_check_branch
          %545 = sbr.rel (%p543) target = $region16
        $region15: #{bert_classifier_forward.1} parent=11 // pred_region
          _
        $region16: #{bert_classifier_forward.1} parent=11 // pred_fallthru
          _
        // Predicated region
        $region17: #{bert_classifier_forward.1} parent=11 // pred_check
          %p546 = pneg %p69
        $region18: #{bert_classifier_forward.1} parent=11 // pred_check_branch
          %548 = sbr.rel (%p546) target = $region20
        $region19: #{bert_classifier_forward.1} parent=11 // pred_region
          _
        $region20: #{bert_classifier_forward.1} parent=11 // pred_fallthru
          _
        // Predicated region
        $region21: #{bert_classifier_forward.1} parent=11 // pred_check
          %p549 = pneg %p90
        $region22: #{bert_classifier_forward.1} parent=11 // pred_check_branch
          %551 = sbr.rel (%p549) target = $region24
        $region23: #{bert_classifier_forward.1} parent=11 // pred_region
          _
        $region24: #{bert_classifier_forward.1} parent=11 // pred_fallthru
          _
        // Predicated region
        $region25: #{bert_classifier_forward.1} parent=11 // pred_check
          %p552 = pneg %p111
        $region26: #{bert_classifier_forward.1} parent=11 // pred_check_branch
          %554 = sbr.rel (%p552) target = $region28
        $region27: #{bert_classifier_forward.1} parent=11 // pred_region
          _
        $region28: #{bert_classifier_forward.1} parent=11 // pred_fallthru
          _
        // Predicated region
        $region29: #{bert_classifier_forward.1} parent=11 // pred_check
          %p555 = pneg %p444
        $region30: #{bert_classifier_forward.1} parent=11 // pred_check_branch
          %557 = sbr.rel (%p555) target = $region32
        $region31: #{bert_classifier_forward.1} parent=11 // pred_region
          _
        $region32: #{bert_classifier_forward.1} parent=11 // pred_fallthru
          _
        // Predicated region
        $region33: #{bert_classifier_forward.1} parent=11 // pred_check
          %p558 = pneg %p465
        $region34: #{bert_classifier_forward.1} parent=11 // pred_check_branch
          %560 = sbr.rel (%p558) target = $region36
        $region35: #{bert_classifier_forward.1} parent=11 // pred_region
          _
        $region36: #{bert_classifier_forward.1} parent=11 // pred_fallthru
          _
        // Predicated region
        $region37: #{bert_classifier_forward.1} parent=11 // pred_check
          %p561 = pneg %p486
        $region38: #{bert_classifier_forward.1} parent=11 // pred_check_branch
          %563 = sbr.rel (%p561) target = $region40
        $region39: #{bert_classifier_forward.1} parent=11 // pred_region
          _
        $region40: #{bert_classifier_forward.1} parent=11 // pred_fallthru
          _
        // Predicated region
        $region41: #{bert_classifier_forward.1} parent=11 // pred_check
          %p564 = pneg %p507
        $region42: #{bert_classifier_forward.1} parent=11 // pred_check_branch
          %566 = sbr.rel (%p564) target = $region44
        $region43: #{bert_classifier_forward.1} parent=11 // pred_region
          _
        $region44: #{bert_classifier_forward.1} parent=11 // pred_fallthru
          _
      $region12: #{bert_classifier_forward.1} parent=5 // pred_fallthru
        _
      %p567 = scmp.lt.s32.totalorder %s27, 2
      // Predicated region
      $region45: #{bert_classifier_forward.1} parent=5 // pred_check
        %p568 = pneg %p567
      $region46: #{bert_classifier_forward.1} parent=5 // pred_check_branch
        %570 = sbr.rel (%p568) target = $region48
      $region47: #{bert_classifier_forward.1} parent=5 // pred_region
        // Predicated region
        $region49: #{bert_classifier_forward.1} parent=47 // pred_check
          %p571 = pneg %p131
        $region50: #{bert_classifier_forward.1} parent=47 // pred_check_branch
          %573 = sbr.rel (%p571) target = $region52
        $region51: #{bert_classifier_forward.1} parent=47 // pred_region
          %p574 = scmp.lt.s32.totalorder %s27, 1
          %s575 = scalar_select %p574, %s27, 1
          %s576 = smul.addr %s575, 4
          %s577 = smul.addr %s576, 4
          %s578 = scalar_lea.vmem %s4, %s577
        $region52: #{bert_classifier_forward.1} parent=47 // pred_fallthru
          _
        // Predicated region
        $region53: #{bert_classifier_forward.1} parent=47 // pred_check
          %p579 = pneg %p157
        $region54: #{bert_classifier_forward.1} parent=47 // pred_check_branch
          %581 = sbr.rel (%p579) target = $region56
        $region55: #{bert_classifier_forward.1} parent=47 // pred_region
          %p582 = scmp.lt.s32.totalorder %s27, 1
          %s583 = scalar_select %p582, %s27, 1
          %s584 = scalar_lea.vmem %s5, %s583
        $region56: #{bert_classifier_forward.1} parent=47 // pred_fallthru
          _
        // Predicated region
        $region57: #{bert_classifier_forward.1} parent=47 // pred_check
          %p585 = pneg %p183
        $region58: #{bert_classifier_forward.1} parent=47 // pred_check_branch
          %587 = sbr.rel (%p585) target = $region60
        $region59: #{bert_classifier_forward.1} parent=47 // pred_region
          %p588 = scmp.lt.s32.totalorder %s27, 1
          %s589 = scalar_select %p588, %s27, 1
          %s590 = smul.addr %s589, 4
          %s591 = smul.addr %s590, 4
          %s592 = scalar_lea.vmem %s6, %s591
        $region60: #{bert_classifier_forward.1} parent=47 // pred_fallthru
          _
        // Predicated region
        $region61: #{bert_classifier_forward.1} parent=47 // pred_check
          %p593 = pneg %p209
        $region62: #{bert_classifier_forward.1} parent=47 // pred_check_branch
          %595 = sbr.rel (%p593) target = $region64
        $region63: #{bert_classifier_forward.1} parent=47 // pred_region
          %p596 = scmp.lt.s32.totalorder %s27, 1
          %s597 = scalar_select %p596, %s27, 1
          %s598 = scalar_lea.vmem %s7, %s597
        $region64: #{bert_classifier_forward.1} parent=47 // pred_fallthru
          _
        // Predicated region
        $region65: #{bert_classifier_forward.1} parent=47 // pred_check
          %p599 = pneg %p235
        $region66: #{bert_classifier_forward.1} parent=47 // pred_check_branch
          %601 = sbr.rel (%p599) target = $region68
        $region67: #{bert_classifier_forward.1} parent=47 // pred_region
          %p602 = scmp.lt.s32.totalorder %s27, 1
          %s603 = scalar_select %p602, %s27, 1
          %s604 = scalar_lea.vmem %s8, %s603
        $region68: #{bert_classifier_forward.1} parent=47 // pred_fallthru
          _
        // Predicated region
        $region69: #{bert_classifier_forward.1} parent=47 // pred_check
          %p605 = pneg %p261
        $region70: #{bert_classifier_forward.1} parent=47 // pred_check_branch
          %607 = sbr.rel (%p605) target = $region72
        $region71: #{bert_classifier_forward.1} parent=47 // pred_region
          %p608 = scmp.lt.s32.totalorder %s27, 1
          %s609 = scalar_select %p608, %s27, 1
          %s610 = scalar_lea.vmem %s9, %s609
        $region72: #{bert_classifier_forward.1} parent=47 // pred_fallthru
          _
        // Predicated region
        $region73: #{bert_classifier_forward.1} parent=47 // pred_check
          %p611 = pneg %p287
        $region74: #{bert_classifier_forward.1} parent=47 // pred_check_branch
          %613 = sbr.rel (%p611) target = $region76
        $region75: #{bert_classifier_forward.1} parent=47 // pred_region
          %p614 = scmp.lt.s32.totalorder %s27, 1
          %s615 = scalar_select %p614, %s27, 1
          %s616 = smul.addr %s615, 4
          %s617 = smul.addr %s616, 4
          %s618 = scalar_lea.vmem %s10, %s617
        $region76: #{bert_classifier_forward.1} parent=47 // pred_fallthru
          _
        // Predicated region
        $region77: #{bert_classifier_forward.1} parent=47 // pred_check
          %p619 = pneg %p313
        $region78: #{bert_classifier_forward.1} parent=47 // pred_check_branch
          %621 = sbr.rel (%p619) target = $region80
        $region79: #{bert_classifier_forward.1} parent=47 // pred_region
          %p622 = scmp.lt.s32.totalorder %s27, 1
          %s623 = scalar_select %p622, %s27, 1
          %s624 = scalar_lea.vmem %s11, %s623
        $region80: #{bert_classifier_forward.1} parent=47 // pred_fallthru
          _
        // Predicated region
        $region81: #{bert_classifier_forward.1} parent=47 // pred_check
          %p625 = pneg %p339
        $region82: #{bert_classifier_forward.1} parent=47 // pred_check_branch
          %627 = sbr.rel (%p625) target = $region84
        $region83: #{bert_classifier_forward.1} parent=47 // pred_region
          %p628 = scmp.lt.s32.totalorder %s27, 1
          %s629 = scalar_select %p628, %s27, 1
          %s630 = smul.addr %s629, 8
          %s631 = smul.addr %s630, 4
          %s632 = scalar_lea.vmem %s12, %s631
        $region84: #{bert_classifier_forward.1} parent=47 // pred_fallthru
          _
        // Predicated region
        $region85: #{bert_classifier_forward.1} parent=47 // pred_check
          %p633 = pneg %p365
        $region86: #{bert_classifier_forward.1} parent=47 // pred_check_branch
          %635 = sbr.rel (%p633) target = $region88
        $region87: #{bert_classifier_forward.1} parent=47 // pred_region
          %p636 = scmp.lt.s32.totalorder %s27, 1
          %s637 = scalar_select %p636, %s27, 1
          %s638 = scalar_lea.vmem %s13, %s637
        $region88: #{bert_classifier_forward.1} parent=47 // pred_fallthru
          _
        // Predicated region
        $region89: #{bert_classifier_forward.1} parent=47 // pred_check
          %p639 = pneg %p391
        $region90: #{bert_classifier_forward.1} parent=47 // pred_check_branch
          %641 = sbr.rel (%p639) target = $region92
        $region91: #{bert_classifier_forward.1} parent=47 // pred_region
          %p642 = scmp.lt.s32.totalorder %s27, 1
          %s643 = scalar_select %p642, %s27, 1
          %s644 = scalar_lea.vmem %s14, %s643
        $region92: #{bert_classifier_forward.1} parent=47 // pred_fallthru
          _
        // Predicated region
        $region93: #{bert_classifier_forward.1} parent=47 // pred_check
          %p645 = pneg %p417
        $region94: #{bert_classifier_forward.1} parent=47 // pred_check_branch
          %647 = sbr.rel (%p645) target = $region96
        $region95: #{bert_classifier_forward.1} parent=47 // pred_region
          %p648 = scmp.lt.s32.totalorder %s27, 1
          %s649 = scalar_select %p648, %s27, 1
          %s650 = scalar_lea.vmem %s15, %s649
        $region96: #{bert_classifier_forward.1} parent=47 // pred_fallthru
          _
      $region48: #{bert_classifier_forward.1} parent=5 // pred_fallthru
        _
      %p651 = scmp.le.s32.totalorder 1, %s27
      %p652 = scmp.lt.s32.totalorder %s27, 3
      %p653 = pnand %p651, %p652
      %p654 = pneg %p653
      // Predicated region
      $region97: #{bert_classifier_forward.1} parent=5 // pred_check
        _
      $region98: #{bert_classifier_forward.1} parent=5 // pred_check_branch
        %656 = sbr.rel (%p653) target = $region100
      $region99: #{bert_classifier_forward.1} parent=5 // pred_region
        %s657 = ssub.s32 %s27, 1
        %p658 = pneg %p48
        %p659 = pneg %p45
        %p660 = pneg %p69
        %p661 = pneg %p66
        %p662 = pneg %p90
        %p663 = pneg %p87
        %p664 = pneg %p111
        %p665 = pneg %p108
        %p666 = scmp.lt.s32.totalorder %s32, 1
        %s667 = scalar_select %p666, %s32, 1
        %s668 = smul.addr %s667, 4
        %s669 = smul.addr %s668, 4
        %s670 = scalar_lea.vmem %s4, %s669
        %p671 = pneg %p137
        %p672 = pneg %p134
        %p673 = scmp.lt.s32.totalorder %s32, 1
        %s674 = scalar_select %p673, %s32, 1
        %s675 = scalar_lea.vmem %s5, %s674
        %p676 = pneg %p163
        %p677 = pneg %p160
        %p678 = scmp.lt.s32.totalorder %s32, 1
        %s679 = scalar_select %p678, %s32, 1
        %s680 = smul.addr %s679, 4
        %s681 = smul.addr %s680, 4
        %s682 = scalar_lea.vmem %s6, %s681
        %p683 = pneg %p189
        %p684 = pneg %p186
        %p685 = scmp.lt.s32.totalorder %s32, 1
        %s686 = scalar_select %p685, %s32, 1
        %s687 = scalar_lea.vmem %s7, %s686
        %p688 = pneg %p215
        %p689 = pneg %p212
        %p690 = scmp.lt.s32.totalorder %s32, 1
        %s691 = scalar_select %p690, %s32, 1
        %s692 = scalar_lea.vmem %s8, %s691
        %p693 = pneg %p241
        %p694 = pneg %p238
        %p695 = scmp.lt.s32.totalorder %s32, 1
        %s696 = scalar_select %p695, %s32, 1
        %s697 = scalar_lea.vmem %s9, %s696
        %p698 = pneg %p267
        %p699 = pneg %p264
        %p700 = scmp.lt.s32.totalorder %s32, 1
        %s701 = scalar_select %p700, %s32, 1
        %s702 = smul.addr %s701, 4
        %s703 = smul.addr %s702, 4
        %s704 = scalar_lea.vmem %s10, %s703
        %p705 = pneg %p293
        %p706 = pneg %p290
        %p707 = scmp.lt.s32.totalorder %s32, 1
        %s708 = scalar_select %p707, %s32, 1
        %s709 = scalar_lea.vmem %s11, %s708
        %p710 = pneg %p319
        %p711 = pneg %p316
        %p712 = scmp.lt.s32.totalorder %s32, 1
        %s713 = scalar_select %p712, %s32, 1
        %s714 = smul.addr %s713, 8
        %s715 = smul.addr %s714, 4
        %s716 = scalar_lea.vmem %s12, %s715
        %p717 = pneg %p345
        %p718 = pneg %p342
        %p719 = scmp.lt.s32.totalorder %s32, 1
        %s720 = scalar_select %p719, %s32, 1
        %s721 = scalar_lea.vmem %s13, %s720
        %p722 = pneg %p371
        %p723 = pneg %p368
        %p724 = scmp.lt.s32.totalorder %s32, 1
        %s725 = scalar_select %p724, %s32, 1
        %s726 = scalar_lea.vmem %s14, %s725
        %p727 = pneg %p397
        %p728 = pneg %p394
        %p729 = scmp.lt.s32.totalorder %s32, 1
        %s730 = scalar_select %p729, %s32, 1
        %s731 = scalar_lea.vmem %s15, %s730
        %p732 = pneg %p423
        %p733 = pneg %p420
        %p734 = pneg %p444
        %p735 = pneg %p441
        %p736 = pneg %p465
        %p737 = pneg %p462
        %p738 = pneg %p486
        %p739 = pneg %p483
        %p740 = pneg %p507
        %p741 = pneg %p504
        %p742 = pneg %p528
        %p743 = pneg %p525
        %p744 = scmp.lt.s32.totalorder %s32, 1
        %s745 = scalar_select %p744, %s32, 1
        %s746 = smul.addr %s745, 4
        %s747 = smul.addr %s746, 4
        %s748 = scalar_lea.vmem %s4, %s747
        %p749 = scmp.lt.s32.totalorder %s32, 1
        %s750 = scalar_select %p749, %s32, 1
        %s751 = scalar_lea.vmem %s5, %s750
        %p752 = scmp.lt.s32.totalorder %s32, 1
        %s753 = scalar_select %p752, %s32, 1
        %s754 = smul.addr %s753, 4
        %s755 = smul.addr %s754, 4
        %s756 = scalar_lea.vmem %s6, %s755
        %p757 = scmp.lt.s32.totalorder %s32, 1
        %s758 = scalar_select %p757, %s32, 1
        %s759 = scalar_lea.vmem %s7, %s758
        %p760 = scmp.lt.s32.totalorder %s32, 1
        %s761 = scalar_select %p760, %s32, 1
        %s762 = scalar_lea.vmem %s8, %s761
        %p763 = scmp.lt.s32.totalorder %s32, 1
        %s764 = scalar_select %p763, %s32, 1
        %s765 = scalar_lea.vmem %s9, %s764
        %p766 = scmp.lt.s32.totalorder %s32, 1
        %s767 = scalar_select %p766, %s32, 1
        %s768 = smul.addr %s767, 4
        %s769 = smul.addr %s768, 4
        %s770 = scalar_lea.vmem %s10, %s769
        %p771 = scmp.lt.s32.totalorder %s32, 1
        %s772 = scalar_select %p771, %s32, 1
        %s773 = scalar_lea.vmem %s11, %s772
        %p774 = scmp.lt.s32.totalorder %s32, 1
        %s775 = scalar_select %p774, %s32, 1
        %s776 = smul.addr %s775, 8
        %s777 = smul.addr %s776, 4
        %s778 = scalar_lea.vmem %s12, %s777
        %p779 = scmp.lt.s32.totalorder %s32, 1
        %s780 = scalar_select %p779, %s32, 1
        %s781 = scalar_lea.vmem %s13, %s780
        %p782 = scmp.lt.s32.totalorder %s32, 1
        %s783 = scalar_select %p782, %s32, 1
        %s784 = scalar_lea.vmem %s14, %s783
        %p785 = scmp.lt.s32.totalorder %s32, 1
        %s786 = scalar_select %p785, %s32, 1
        %s787 = scalar_lea.vmem %s15, %s786
        %p789 = scmp.eq.s32.totalorder %s32, 0
        // Predicated region
        $region101: #{bert_classifier_forward.1} parent=99 // pred_check
          %p790 = pneg %p789
        $region102: #{bert_classifier_forward.1} parent=99 // pred_check_branch
          %792 = sbr.rel (%p790) target = $region104
        $region103: #{bert_classifier_forward.1} parent=99 // pred_region
          %v793 = vld [vmem:[%s0] sm:$0xff]
          %v794 = vld [vmem:[%s0 + $0x8] sm:$0xff]
          %v795 = vld [vmem:[%s2] sm:$0x1]
          %v796 = vld [vmem:[%s3] sm:$0x1]
          %vm797 = vcmask 261120
          %v798 = vsel %vm797, %v793, 0.0
          %799 = vadd.xlane.f32.xlu0 %v798
          %v800 = vpop.xlane.xlu0 %799
          %v801 = vsel %vm797, %v794, 0.0
          %802 = vadd.xlane.f32.xlu0 %v801
          %v803 = vpop.xlane.xlu0 %802
          %v804 = vrcp.pop 32.0
          %v805 = vmul.f32 %v800, %v804
          %v806 = vmul.f32 %v803, %v804
          %v807 = vsub.f32 %v793, %v805
          %v808 = vsub.f32 %v794, %v806
          %v809 = vmul.f32 %v807, %v807
          %v810 = vmul.f32 %v808, %v808
          %v811 = vsel %vm797, %v809, 0.0
          %812 = vadd.xlane.f32.xlu0 %v811
          %v813 = vpop.xlane.xlu0 %812
          %v814 = vsel %vm797, %v810, 0.0
          %815 = vadd.xlane.f32.xlu0 %v814
          %v816 = vpop.xlane.xlu0 %815
          %v817 = vmul.f32 %v813, %v804
          %v818 = vmul.f32 %v816, %v804
          %v819 = vadd.f32 %v817, 1e-12
          %v820 = vadd.f32 %v818, 1e-12
          %v821 = vrsqrt.pop %v819
          %v822 = vrsqrt.pop %v820
          %v823 = vmul.f32 %v807, %v821
          %v824 = vmul.f32 %v808, %v822
          %v826 = vlaneseq
          %v827 = vshrl.u32 %v826, 7
          %v828 = vsub.s32 0, %v827
          %v829 = vrot.slane %v795, %v828
          %v831 = vmul.f32 %v823, %v829
          %v832 = vmul.f32 %v824, %v829
          %v834 = vlaneseq
          %v835 = vshrl.u32 %v834, 7
          %v836 = vsub.s32 0, %v835
          %v837 = vrot.slane %v796, %v836
          %v839 = vadd.f32 %v831, %v837
          %v840 = vadd.f32 %v832, %v837
          %841 = vst.msk [vmem:[#allocation2] sm:$0xff] %vm797, %v839
          %842 = vst.msk [vmem:[#allocation2 + $0x8] sm:$0xff] %vm797, %v840
          %vm843 = vcmask 25600
          %844 = vst.msk [vmem:[#allocation3] sm:$0x3] %vm843, 0.0
        $region104: #{bert_classifier_forward.1} parent=99 // pred_fallthru
          _
        %v845 = vld [vmem:[#allocation2] sm:$0xff]
        %v846 = vld [vmem:[#allocation2 + $0x8] sm:$0xff]
        %v847 = vpack.c.bf16 %v846, %v845
        %v848 = vld [vmem:[%s748] sm:$0xf]
        %v849 = vld [vmem:[%s748 + $0x4] sm:$0xf]
        %v850 = vld [vmem:[%s748 + $0x8] sm:$0xf]
        %v851 = vld [vmem:[%s748 + $0xc] sm:$0xf]
        %v852 = vld [vmem:[%s751] sm:$0x1]
        %v854 = vlaneseq
        %v855 = vshrl.u32 %v854, 7
        %v856 = vsub.s32 0, %v855
        %v857 = vrot.slane %v852, %v856
        %v863 = vunpack.c.l.b16 %v848
        %v864 = vunpack.c.l.b16 %v849
        %v865 = vunpack.c.l.b16 %v850
        %v866 = vunpack.c.l.b16 %v851
        %v867 = vpack.c.b16 %v864, %v863
        %v868 = vpack.c.b16 %v866, %v865
        %vm871 = vcmask 261120
        %v873 = vsel %vm871, %v847, 0
        %875 = vmatprep.subr.bf16.mxu0 0
        %876 = vmatpush1.bf16.msra.mxu0 %v867
        %877 = vmatprep.subr.bf16.mxu0 0
        %878 = vmatpush1.bf16.msra.mxu0 %v868
        %879 = vmatprep.subr.bf16.mxu0 0
        %880 = vmatpush1.bf16.msra.mxu0 0
        %881 = vmatprep.subr.bf16.mxu0 0
        %882 = vmatpush1.bf16.msra.mxu0 0
        %883 = vmatprep.subr.bf16.mxu0 0
        %884 = vmatpush1.bf16.msra.mxu0 0
        %885 = vmatprep.subr.bf16.mxu0 0
        %886 = vmatpush1.bf16.msra.mxu0 0
        %887 = vmatprep.subr.bf16.mxu0 0
        %888 = vmatpush1.bf16.msra.mxu0 0
        %889 = vmatprep.subr.bf16.mxu0 0
        %890 = vmatpush1.bf16.msra.mxu0 0
        %891 = vmatprep.subr.bf16.mxu0 0
        %892 = vmatpush1.bf16.msra.mxu0 0
        %893 = vmatprep.subr.bf16.mxu0 0
        %894 = vmatpush1.bf16.msra.mxu0 0
        %895 = vmatprep.subr.bf16.mxu0 0
        %896 = vmatpush1.bf16.msra.mxu0 0
        %897 = vmatprep.subr.bf16.mxu0 0
        %898 = vmatpush1.bf16.msra.mxu0 0
        %899 = vmatprep.subr.bf16.mxu0 0
        %900 = vmatpush1.bf16.msra.mxu0 0
        %901 = vmatprep.subr.bf16.mxu0 0
        %902 = vmatpush1.bf16.msra.mxu0 0
        %903 = vmatprep.subr.bf16.mxu0 0
        %904 = vmatpush1.bf16.msra.mxu0 0
        %905 = vmatprep.subr.bf16.mxu0 0
        %906 = vmatpush1.bf16.msra.mxu0 0
        %907 = vmatprep.mubr.bf16.mxu0 0
        %908 = vmatmul.mubr.bf16.gmra.mrb[0].mxu0 %v873
        %v909 = vpop.f32.mrb[0].mxu0
        %v910 = vadd.f32 %v857, %v909
        %v911 = vpop.f32.mrb[0].mxu0
        %v912 = vpop.f32.mrb[0].mxu0
        %v913 = vadd.f32 %v857, %v912
        %v914 = vpop.f32.mrb[0].mxu0
        %915 = vdwg.mxu0
        %918 = vrot.lane.b32.xlu0 %v910, 112
        %v919 = vpop.permute.xlu0 %918
        %920 = vrot.lane.b32.xlu0 %v913, 112
        %v921 = vpop.permute.xlu0 %920
        %v924 = vpack.c.bf16 %v910, %v910
        %v925 = vpack.c.bf16 %v913, %v913
        %v926 = vpack.c.bf16 %v919, %v919
        %v927 = vpack.c.bf16 %v921, %v921
        %929 = vrot.lane.b32.xlu0 %v924, 96
        %v930 = vpop.permute.xlu0 %929
        %vm931 = vcmask 130048
        %v933 = vsel %vm931, %v924, 0
        %v936 = vsel %vm931, %v930, 0
        %938 = vmatprep.subr.bf16.mxu0 0
        %939 = vmatpush1.bf16.xpose.msra.mxu0 %v936
        %940 = vmatprep.subr.bf16.mxu0 0
        %941 = vmatpush1.bf16.xpose.msra.mxu0 0
        %942 = vmatprep.subr.bf16.mxu0 0
        %943 = vmatpush1.bf16.xpose.msra.mxu0 0
        %944 = vmatprep.subr.bf16.mxu0 0
        %945 = vmatpush1.bf16.xpose.msra.mxu0 0
        %946 = vmatprep.subr.bf16.mxu0 0
        %947 = vmatpush1.bf16.xpose.msra.mxu0 0
        %948 = vmatprep.subr.bf16.mxu0 0
        %949 = vmatpush1.bf16.xpose.msra.mxu0 0
        %950 = vmatprep.subr.bf16.mxu0 0
        %951 = vmatpush1.bf16.xpose.msra.mxu0 0
        %952 = vmatprep.subr.bf16.mxu0 0
        %953 = vmatpush1.bf16.xpose.msra.mxu0 0
        %954 = vmatprep.subr.bf16.mxu0 0
        %955 = vmatpush1.bf16.xpose.msra.mxu0 0
        %956 = vmatprep.subr.bf16.mxu0 0
        %957 = vmatpush1.bf16.xpose.msra.mxu0 0
        %958 = vmatprep.subr.bf16.mxu0 0
        %959 = vmatpush1.bf16.xpose.msra.mxu0 0
        %960 = vmatprep.subr.bf16.mxu0 0
        %961 = vmatpush1.bf16.xpose.msra.mxu0 0
        %962 = vmatprep.subr.bf16.mxu0 0
        %963 = vmatpush1.bf16.xpose.msra.mxu0 0
        %964 = vmatprep.subr.bf16.mxu0 0
        %965 = vmatpush1.bf16.xpose.msra.mxu0 0
        %966 = vmatprep.subr.bf16.mxu0 0
        %967 = vmatpush1.bf16.xpose.msra.mxu0 0
        %968 = vmatprep.subr.bf16.mxu0 0
        %969 = vmatpush1.bf16.xpose.msra.mxu0 0
        %970 = vmatprep.mubr.bf16.mxu0 0
        %971 = vmatmul.mubr.bf16.gmra.mrb[0].mxu0 %v933
        %v972 = vpop.f32.mrb[0].mxu0
        %v973 = vadd.f32 0.0, %v972
        %v974 = vpop.f32.mrb[0].mxu0
        %v975 = vpop.f32.mrb[0].mxu0
        %v976 = vpop.f32.mrb[0].mxu0
        %977 = vdwg.mxu0
        %979 = vrot.lane.b32.xlu0 %v925, 96
        %v980 = vpop.permute.xlu0 %979
        %v982 = vsel %vm931, %v925, 0
        %v985 = vsel %vm931, %v980, 0
        %987 = vmatprep.subr.bf16.mxu0 0
        %988 = vmatpush1.bf16.xpose.msra.mxu0 %v985
        %989 = vmatprep.subr.bf16.mxu0 0
        %990 = vmatpush1.bf16.xpose.msra.mxu0 0
        %991 = vmatprep.subr.bf16.mxu0 0
        %992 = vmatpush1.bf16.xpose.msra.mxu0 0
        %993 = vmatprep.subr.bf16.mxu0 0
        %994 = vmatpush1.bf16.xpose.msra.mxu0 0
        %995 = vmatprep.subr.bf16.mxu0 0
        %996 = vmatpush1.bf16.xpose.msra.mxu0 0
        %997 = vmatprep.subr.bf16.mxu0 0
        %998 = vmatpush1.bf16.xpose.msra.mxu0 0
        %999 = vmatprep.subr.bf16.mxu0 0
        %1000 = vmatpush1.bf16.xpose.msra.mxu0 0
        %1001 = vmatprep.subr.bf16.mxu0 0
        %1002 = vmatpush1.bf16.xpose.msra.mxu0 0
        %1003 = vmatprep.subr.bf16.mxu0 0
        %1004 = vmatpush1.bf16.xpose.msra.mxu0 0
        %1005 = vmatprep.subr.bf16.mxu0 0
        %1006 = vmatpush1.bf16.xpose.msra.mxu0 0
        %1007 = vmatprep.subr.bf16.mxu0 0
        %1008 = vmatpush1.bf16.xpose.msra.mxu0 0
        %1009 = vmatprep.subr.bf16.mxu0 0
        %1010 = vmatpush1.bf16.xpose.msra.mxu0 0
        %1011 = vmatprep.subr.bf16.mxu0 0
        %1012 = vmatpush1.bf16.xpose.msra.mxu0 0
        %1013 = vmatprep.subr.bf16.mxu0 0
        %1014 = vmatpush1.bf16.xpose.msra.mxu0 0
        %1015 = vmatprep.subr.bf16.mxu0 0
        %1016 = vmatpush1.bf16.xpose.msra.mxu0 0
        %1017 = vmatprep.subr.bf16.mxu0 0
        %1018 = vmatpush1.bf16.xpose.msra.mxu0 0
        %1019 = vmatprep.mubr.bf16.mxu0 0
        %1020 = vmatmul.mubr.bf16.gmra.mrb[0].mxu0 %v982
        %v1021 = vpop.f32.mrb[0].mxu0
        %v1022 = vadd.f32 0.0, %v1021
        %v1023 = vpop.f32.mrb[0].mxu0
        %v1024 = vpop.f32.mrb[0].mxu0
        %v1025 = vpop.f32.mrb[0].mxu0
        %1026 = vdwg.mxu0
        %1028 = vrot.lane.b32.xlu0 %v926, 96
        %v1029 = vpop.permute.xlu0 %1028
        %v1031 = vsel %vm931, %v926, 0
        %v1034 = vsel %vm931, %v1029, 0
        %1036 = vmatprep.subr.bf16.mxu0 0
        %1037 = vmatpush1.bf16.xpose.msra.mxu0 %v1034
        %1038 = vmatprep.subr.bf16.mxu0 0
        %1039 = vmatpush1.bf16.xpose.msra.mxu0 0
        %1040 = vmatprep.subr.bf16.mxu0 0
        %1041 = vmatpush1.bf16.xpose.msra.mxu0 0
        %1042 = vmatprep.subr.bf16.mxu0 0
        %1043 = vmatpush1.bf16.xpose.msra.mxu0 0
        %1044 = vmatprep.subr.bf16.mxu0 0
        %1045 = vmatpush1.bf16.xpose.msra.mxu0 0
        %1046 = vmatprep.subr.bf16.mxu0 0
        %1047 = vmatpush1.bf16.xpose.msra.mxu0 0
        %1048 = vmatprep.subr.bf16.mxu0 0
        %1049 = vmatpush1.bf16.xpose.msra.mxu0 0
        %1050 = vmatprep.subr.bf16.mxu0 0
        %1051 = vmatpush1.bf16.xpose.msra.mxu0 0
        %1052 = vmatprep.subr.bf16.mxu0 0
        %1053 = vmatpush1.bf16.xpose.msra.mxu0 0
        %1054 = vmatprep.subr.bf16.mxu0 0
        %1055 = vmatpush1.bf16.xpose.msra.mxu0 0
        %1056 = vmatprep.subr.bf16.mxu0 0
        %1057 = vmatpush1.bf16.xpose.msra.mxu0 0
        %1058 = vmatprep.subr.bf16.mxu0 0
        %1059 = vmatpush1.bf16.xpose.msra.mxu0 0
        %1060 = vmatprep.subr.bf16.mxu0 0
        %1061 = vmatpush1.bf16.xpose.msra.mxu0 0
        %1062 = vmatprep.subr.bf16.mxu0 0
        %1063 = vmatpush1.bf16.xpose.msra.mxu0 0
        %1064 = vmatprep.subr.bf16.mxu0 0
        %1065 = vmatpush1.bf16.xpose.msra.mxu0 0
        %1066 = vmatprep.subr.bf16.mxu0 0
        %1067 = vmatpush1.bf16.xpose.msra.mxu0 0
        %1068 = vmatprep.mubr.bf16.mxu0 0
        %1069 = vmatmul.mubr.bf16.gmra.mrb[0].mxu0 %v1031
        %v1070 = vpop.f32.mrb[0].mxu0
        %v1071 = vadd.f32 0.0, %v1070
        %v1072 = vpop.f32.mrb[0].mxu0
        %v1073 = vpop.f32.mrb[0].mxu0
        %v1074 = vpop.f32.mrb[0].mxu0
        %1075 = vdwg.mxu0
        %1077 = vrot.lane.b32.xlu0 %v927, 96
        %v1078 = vpop.permute.xlu0 %1077
        %v1080 = vsel %vm931, %v927, 0
        %v1083 = vsel %vm931, %v1078, 0
        %1085 = vmatprep.subr.bf16.mxu0 0
        %1086 = vmatpush1.bf16.xpose.msra.mxu0 %v1083
        %1087 = vmatprep.subr.bf16.mxu0 0
        %1088 = vmatpush1.bf16.xpose.msra.mxu0 0
        %1089 = vmatprep.subr.bf16.mxu0 0
        %1090 = vmatpush1.bf16.xpose.msra.mxu0 0
        %1091 = vmatprep.subr.bf16.mxu0 0
        %1092 = vmatpush1.bf16.xpose.msra.mxu0 0
        %1093 = vmatprep.subr.bf16.mxu0 0
        %1094 = vmatpush1.bf16.xpose.msra.mxu0 0
        %1095 = vmatprep.subr.bf16.mxu0 0
        %1096 = vmatpush1.bf16.xpose.msra.mxu0 0
        %1097 = vmatprep.subr.bf16.mxu0 0
        %1098 = vmatpush1.bf16.xpose.msra.mxu0 0
        %1099 = vmatprep.subr.bf16.mxu0 0
        %1100 = vmatpush1.bf16.xpose.msra.mxu0 0
        %1101 = vmatprep.subr.bf16.mxu0 0
        %1102 = vmatpush1.bf16.xpose.msra.mxu0 0
        %1103 = vmatprep.subr.bf16.mxu0 0
        %1104 = vmatpush1.bf16.xpose.msra.mxu0 0
        %1105 = vmatprep.subr.bf16.mxu0 0
        %1106 = vmatpush1.bf16.xpose.msra.mxu0 0
        %1107 = vmatprep.subr.bf16.mxu0 0
        %1108 = vmatpush1.bf16.xpose.msra.mxu0 0
        %1109 = vmatprep.subr.bf16.mxu0 0
        %1110 = vmatpush1.bf16.xpose.msra.mxu0 0
        %1111 = vmatprep.subr.bf16.mxu0 0
        %1112 = vmatpush1.bf16.xpose.msra.mxu0 0
        %1113 = vmatprep.subr.bf16.mxu0 0
        %1114 = vmatpush1.bf16.xpose.msra.mxu0 0
        %1115 = vmatprep.subr.bf16.mxu0 0
        %1116 = vmatpush1.bf16.xpose.msra.mxu0 0
        %1117 = vmatprep.mubr.bf16.mxu0 0
        %1118 = vmatmul.mubr.bf16.gmra.mrb[0].mxu0 %v1080
        %v1119 = vpop.f32.mrb[0].mxu0
        %v1120 = vadd.f32 0.0, %v1119
        %v1121 = vpop.f32.mrb[0].mxu0
        %v1122 = vpop.f32.mrb[0].mxu0
        %v1123 = vpop.f32.mrb[0].mxu0
        %1124 = vdwg.mxu0
        %v1125 = vmul.f32 %v973, 0.25
        %v1126 = vmul.f32 %v1022, 0.25
        %v1127 = vmul.f32 %v1071, 0.25
        %v1128 = vmul.f32 %v1120, 0.25
        %v1129 = vld [vmem:[%s1] sm:$0x1]
        %v1130 = vld [vmem:[%s1 + $0x1] sm:$0x1]
        %v1131 = vld [vmem:[%s1 + $0x2] sm:$0x1]
        %v1132 = vld [vmem:[%s1 + $0x3] sm:$0x1]
        %v1137 = vlaneseq
        %v1138 = vshrl.u32 %v1137, 7
        %v1139 = vsub.s32 0, %v1138
        %v1140 = vrot.slane %v1129, %v1139
        %v1141 = vlaneseq
        %v1142 = vshrl.u32 %v1141, 7
        %v1143 = vsub.s32 0, %v1142
        %v1144 = vrot.slane %v1130, %v1143
        %v1145 = vlaneseq
        %v1146 = vshrl.u32 %v1145, 7
        %v1147 = vsub.s32 0, %v1146
        %v1148 = vrot.slane %v1131, %v1147
        %v1149 = vlaneseq
        %v1150 = vshrl.u32 %v1149, 7
        %v1151 = vsub.s32 0, %v1150
        %v1152 = vrot.slane %v1132, %v1151
        %v1157 = vadd.f32 %v1125, %v1140
        %v1158 = vadd.f32 %v1126, %v1144
        %v1159 = vadd.f32 %v1127, %v1148
        %v1160 = vadd.f32 %v1128, %v1152
        %vm1161 = vcmask 64512
        %v1162 = vsel %vm1161, %v1157, -inf
        %1163 = vmax.xlane.f32.xlu0 %v1162
        %v1164 = vpop.xlane.xlu0 %1163
        %v1165 = vsel %vm1161, %v1158, -inf
        %1166 = vmax.xlane.f32.xlu0 %v1165
        %v1167 = vpop.xlane.xlu0 %1166
        %v1168 = vsel %vm1161, %v1159, -inf
        %1169 = vmax.xlane.f32.xlu0 %v1168
        %v1170 = vpop.xlane.xlu0 %1169
        %v1171 = vsel %vm1161, %v1160, -inf
        %1172 = vmax.xlane.f32.xlu0 %v1171
        %v1173 = vpop.xlane.xlu0 %1172
        %v1174 = vsub.f32 %v1157, %v1164
        %v1175 = vsub.f32 %v1158, %v1167
        %v1176 = vsub.f32 %v1159, %v1170
        %v1177 = vsub.f32 %v1160, %v1173
        %v1178 = vmul.f32 %v1174, 1.442695
        %v1179 = vpow.pop %v1178
        %v1180 = vmul.f32 %v1175, 1.442695
        %v1181 = vpow.pop %v1180
        %v1182 = vmul.f32 %v1176, 1.442695
        %v1183 = vpow.pop %v1182
        %v1184 = vmul.f32 %v1177, 1.442695
        %v1185 = vpow.pop %v1184
        %v1186 = vsel %vm1161, %v1179, 0.0
        %1187 = vadd.xlane.f32.xlu0 %v1186
        %v1188 = vpop.xlane.xlu0 %1187
        %v1189 = vsel %vm1161, %v1181, 0.0
        %1190 = vadd.xlane.f32.xlu0 %v1189
        %v1191 = vpop.xlane.xlu0 %1190
        %v1192 = vsel %vm1161, %v1183, 0.0
        %1193 = vadd.xlane.f32.xlu0 %v1192
        %v1194 = vpop.xlane.xlu0 %1193
        %v1195 = vsel %vm1161, %v1185, 0.0
        %1196 = vadd.xlane.f32.xlu0 %v1195
        %v1197 = vpop.xlane.xlu0 %1196
        %v1198 = vrcp.pop %v1188
        %v1199 = vrcp.pop %v1191
        %v1200 = vrcp.pop %v1194
        %v1201 = vrcp.pop %v1197
        %v1202 = vmul.f32 %v1179, %v1198
        %v1203 = vmul.f32 %v1181, %v1199
        %v1204 = vmul.f32 %v1183, %v1200
        %v1205 = vmul.f32 %v1185, %v1201
        %v1206 = vpack.c.bf16 %v1202, %v1202
        %v1207 = vpack.c.bf16 %v1203, %v1203
        %v1208 = vpack.c.bf16 %v1204, %v1204
        %v1209 = vpack.c.bf16 %v1205, %v1205
        %1210 = vrot.lane.b32.xlu0 %v924, 64
        %v1211 = vpop.permute.xlu0 %1210
        %v1213 = vsel %vm1161, %v1206, 0
        %vm1215 = vcmask 1043456
        %v1217 = vsel %vm1215, %v1211, 0
        %1219 = vmatprep.subr.bf16.mxu0 0
        %1220 = vmatpush1.bf16.msra.mxu0 %v1217
        %1221 = vmatprep.subr.bf16.mxu0 0
        %1222 = vmatpush1.bf16.msra.mxu0 0
        %1223 = vmatprep.subr.bf16.mxu0 0
        %1224 = vmatpush1.bf16.msra.mxu0 0
        %1225 = vmatprep.subr.bf16.mxu0 0
        %1226 = vmatpush1.bf16.msra.mxu0 0
        %1227 = vmatprep.subr.bf16.mxu0 0
        %1228 = vmatpush1.bf16.msra.mxu0 0
        %1229 = vmatprep.subr.bf16.mxu0 0
        %1230 = vmatpush1.bf16.msra.mxu0 0
        %1231 = vmatprep.subr.bf16.mxu0 0
        %1232 = vmatpush1.bf16.msra.mxu0 0
        %1233 = vmatprep.subr.bf16.mxu0 0
        %1234 = vmatpush1.bf16.msra.mxu0 0
        %1235 = vmatprep.subr.bf16.mxu0 0
        %1236 = vmatpush1.bf16.msra.mxu0 0
        %1237 = vmatprep.subr.bf16.mxu0 0
        %1238 = vmatpush1.bf16.msra.mxu0 0
        %1239 = vmatprep.subr.bf16.mxu0 0
        %1240 = vmatpush1.bf16.msra.mxu0 0
        %1241 = vmatprep.subr.bf16.mxu0 0
        %1242 = vmatpush1.bf16.msra.mxu0 0
        %1243 = vmatprep.subr.bf16.mxu0 0
        %1244 = vmatpush1.bf16.msra.mxu0 0
        %1245 = vmatprep.subr.bf16.mxu0 0
        %1246 = vmatpush1.bf16.msra.mxu0 0
        %1247 = vmatprep.subr.bf16.mxu0 0
        %1248 = vmatpush1.bf16.msra.mxu0 0
        %1249 = vmatprep.subr.bf16.mxu0 0
        %1250 = vmatpush1.bf16.msra.mxu0 0
        %1251 = vmatprep.mubr.bf16.mxu0 0
        %1252 = vmatmul.mubr.bf16.gmra.mrb[0].mxu0 %v1213
        %v1253 = vpop.f32.mrb[0].mxu0
        %v1254 = vadd.f32 0.0, %v1253
        %v1255 = vpop.f32.mrb[0].mxu0
        %v1256 = vpop.f32.mrb[0].mxu0
        %v1257 = vpop.f32.mrb[0].mxu0
        %1258 = vdwg.mxu0
        %1259 = vrot.lane.b32.xlu0 %v925, 64
        %v1260 = vpop.permute.xlu0 %1259
        %v1262 = vsel %vm1161, %v1207, 0
        %v1265 = vsel %vm1215, %v1260, 0
        %1267 = vmatprep.subr.bf16.mxu0 0
        %1268 = vmatpush1.bf16.msra.mxu0 %v1265
        %1269 = vmatprep.subr.bf16.mxu0 0
        %1270 = vmatpush1.bf16.msra.mxu0 0
        %1271 = vmatprep.subr.bf16.mxu0 0
        %1272 = vmatpush1.bf16.msra.mxu0 0
        %1273 = vmatprep.subr.bf16.mxu0 0
        %1274 = vmatpush1.bf16.msra.mxu0 0
        %1275 = vmatprep.subr.bf16.mxu0 0
        %1276 = vmatpush1.bf16.msra.mxu0 0
        %1277 = vmatprep.subr.bf16.mxu0 0
        %1278 = vmatpush1.bf16.msra.mxu0 0
        %1279 = vmatprep.subr.bf16.mxu0 0
        %1280 = vmatpush1.bf16.msra.mxu0 0
        %1281 = vmatprep.subr.bf16.mxu0 0
        %1282 = vmatpush1.bf16.msra.mxu0 0
        %1283 = vmatprep.subr.bf16.mxu0 0
        %1284 = vmatpush1.bf16.msra.mxu0 0
        %1285 = vmatprep.subr.bf16.mxu0 0
        %1286 = vmatpush1.bf16.msra.mxu0 0
        %1287 = vmatprep.subr.bf16.mxu0 0
        %1288 = vmatpush1.bf16.msra.mxu0 0
        %1289 = vmatprep.subr.bf16.mxu0 0
        %1290 = vmatpush1.bf16.msra.mxu0 0
        %1291 = vmatprep.subr.bf16.mxu0 0
        %1292 = vmatpush1.bf16.msra.mxu0 0
        %1293 = vmatprep.subr.bf16.mxu0 0
        %1294 = vmatpush1.bf16.msra.mxu0 0
        %1295 = vmatprep.subr.bf16.mxu0 0
        %1296 = vmatpush1.bf16.msra.mxu0 0
        %1297 = vmatprep.subr.bf16.mxu0 0
        %1298 = vmatpush1.bf16.msra.mxu0 0
        %1299 = vmatprep.mubr.bf16.mxu0 0
        %1300 = vmatmul.mubr.bf16.gmra.mrb[0].mxu0 %v1262
        %v1301 = vpop.f32.mrb[0].mxu0
        %v1302 = vadd.f32 0.0, %v1301
        %v1303 = vpop.f32.mrb[0].mxu0
        %v1304 = vpop.f32.mrb[0].mxu0
        %v1305 = vpop.f32.mrb[0].mxu0
        %1306 = vdwg.mxu0
        %1307 = vrot.lane.b32.xlu0 %v926, 64
        %v1308 = vpop.permute.xlu0 %1307
        %v1310 = vsel %vm1161, %v1208, 0
        %v1313 = vsel %vm1215, %v1308, 0
        %1315 = vmatprep.subr.bf16.mxu0 0
        %1316 = vmatpush1.bf16.msra.mxu0 %v1313
        %1317 = vmatprep.subr.bf16.mxu0 0
        %1318 = vmatpush1.bf16.msra.mxu0 0
        %1319 = vmatprep.subr.bf16.mxu0 0
        %1320 = vmatpush1.bf16.msra.mxu0 0
        %1321 = vmatprep.subr.bf16.mxu0 0
        %1322 = vmatpush1.bf16.msra.mxu0 0
        %1323 = vmatprep.subr.bf16.mxu0 0
        %1324 = vmatpush1.bf16.msra.mxu0 0
        %1325 = vmatprep.subr.bf16.mxu0 0
        %1326 = vmatpush1.bf16.msra.mxu0 0
        %1327 = vmatprep.subr.bf16.mxu0 0
        %1328 = vmatpush1.bf16.msra.mxu0 0
        %1329 = vmatprep.subr.bf16.mxu0 0
        %1330 = vmatpush1.bf16.msra.mxu0 0
        %1331 = vmatprep.subr.bf16.mxu0 0
        %1332 = vmatpush1.bf16.msra.mxu0 0
        %1333 = vmatprep.subr.bf16.mxu0 0
        %1334 = vmatpush1.bf16.msra.mxu0 0
        %1335 = vmatprep.subr.bf16.mxu0 0
        %1336 = vmatpush1.bf16.msra.mxu0 0
        %1337 = vmatprep.subr.bf16.mxu0 0
        %1338 = vmatpush1.bf16.msra.mxu0 0
        %1339 = vmatprep.subr.bf16.mxu0 0
        %1340 = vmatpush1.bf16.msra.mxu0 0
        %1341 = vmatprep.subr.bf16.mxu0 0
        %1342 = vmatpush1.bf16.msra.mxu0 0
        %1343 = vmatprep.subr.bf16.mxu0 0
        %1344 = vmatpush1.bf16.msra.mxu0 0
        %1345 = vmatprep.subr.bf16.mxu0 0
        %1346 = vmatpush1.bf16.msra.mxu0 0
        %1347 = vmatprep.mubr.bf16.mxu0 0
        %1348 = vmatmul.mubr.bf16.gmra.mrb[0].mxu0 %v1310
        %v1349 = vpop.f32.mrb[0].mxu0
        %v1350 = vadd.f32 0.0, %v1349
        %v1351 = vpop.f32.mrb[0].mxu0
        %v1352 = vpop.f32.mrb[0].mxu0
        %v1353 = vpop.f32.mrb[0].mxu0
        %1354 = vdwg.mxu0
        %1355 = vrot.lane.b32.xlu0 %v927, 64
        %v1356 = vpop.permute.xlu0 %1355
        %v1358 = vsel %vm1161, %v1209, 0
        %v1361 = vsel %vm1215, %v1356, 0
        %1363 = vmatprep.subr.bf16.mxu0 0
        %1364 = vmatpush1.bf16.msra.mxu0 %v1361
        %1365 = vmatprep.subr.bf16.mxu0 0
        %1366 = vmatpush1.bf16.msra.mxu0 0
        %1367 = vmatprep.subr.bf16.mxu0 0
        %1368 = vmatpush1.bf16.msra.mxu0 0
        %1369 = vmatprep.subr.bf16.mxu0 0
        %1370 = vmatpush1.bf16.msra.mxu0 0
        %1371 = vmatprep.subr.bf16.mxu0 0
        %1372 = vmatpush1.bf16.msra.mxu0 0
        %1373 = vmatprep.subr.bf16.mxu0 0
        %1374 = vmatpush1.bf16.msra.mxu0 0
        %1375 = vmatprep.subr.bf16.mxu0 0
        %1376 = vmatpush1.bf16.msra.mxu0 0
        %1377 = vmatprep.subr.bf16.mxu0 0
        %1378 = vmatpush1.bf16.msra.mxu0 0
        %1379 = vmatprep.subr.bf16.mxu0 0
        %1380 = vmatpush1.bf16.msra.mxu0 0
        %1381 = vmatprep.subr.bf16.mxu0 0
        %1382 = vmatpush1.bf16.msra.mxu0 0
        %1383 = vmatprep.subr.bf16.mxu0 0
        %1384 = vmatpush1.bf16.msra.mxu0 0
        %1385 = vmatprep.subr.bf16.mxu0 0
        %1386 = vmatpush1.bf16.msra.mxu0 0
        %1387 = vmatprep.subr.bf16.mxu0 0
        %1388 = vmatpush1.bf16.msra.mxu0 0
        %1389 = vmatprep.subr.bf16.mxu0 0
        %1390 = vmatpush1.bf16.msra.mxu0 0
        %1391 = vmatprep.subr.bf16.mxu0 0
        %1392 = vmatpush1.bf16.msra.mxu0 0
        %1393 = vmatprep.subr.bf16.mxu0 0
        %1394 = vmatpush1.bf16.msra.mxu0 0
        %1395 = vmatprep.mubr.bf16.mxu0 0
        %1396 = vmatmul.mubr.bf16.gmra.mrb[0].mxu0 %v1358
        %v1397 = vpop.f32.mrb[0].mxu0
        %v1398 = vadd.f32 0.0, %v1397
        %v1399 = vpop.f32.mrb[0].mxu0
        %v1400 = vpop.f32.mrb[0].mxu0
        %v1401 = vpop.f32.mrb[0].mxu0
        %1402 = vdwg.mxu0
        %v1403 = vpack.c.bf16 %v1302, %v1254
        %v1404 = vpack.c.bf16 %v1398, %v1350
        %v1405 = vld [vmem:[%s756] sm:$0xf]
        %v1406 = vld [vmem:[%s756 + $0x4] sm:$0xf]
        %v1407 = vld [vmem:[%s756 + $0x8] sm:$0xf]
        %v1408 = vld [vmem:[%s756 + $0xc] sm:$0xf]
        %v1411 = vunpack.c.l.b16 %v1405
        %v1412 = vunpack.c.l.b16 %v1406
        %v1413 = vpack.c.b16 %v1412, %v1411
        %v1416 = vsel %vm931, %v1403, 0
        %1418 = vmatprep.subr.bf16.mxu0 0
        %1419 = vmatpush1.bf16.msra.mxu0 %v1413
        %1420 = vmatprep.subr.bf16.mxu0 0
        %1421 = vmatpush1.bf16.msra.mxu0 0
        %1422 = vmatprep.subr.bf16.mxu0 0
        %1423 = vmatpush1.bf16.msra.mxu0 0
        %1424 = vmatprep.subr.bf16.mxu0 0
        %1425 = vmatpush1.bf16.msra.mxu0 0
        %1426 = vmatprep.subr.bf16.mxu0 0
        %1427 = vmatpush1.bf16.msra.mxu0 0
        %1428 = vmatprep.subr.bf16.mxu0 0
        %1429 = vmatpush1.bf16.msra.mxu0 0
        %1430 = vmatprep.subr.bf16.mxu0 0
        %1431 = vmatpush1.bf16.msra.mxu0 0
        %1432 = vmatprep.subr.bf16.mxu0 0
        %1433 = vmatpush1.bf16.msra.mxu0 0
        %1434 = vmatprep.subr.bf16.mxu0 0
        %1435 = vmatpush1.bf16.msra.mxu0 0
        %1436 = vmatprep.subr.bf16.mxu0 0
        %1437 = vmatpush1.bf16.msra.mxu0 0
        %1438 = vmatprep.subr.bf16.mxu0 0
        %1439 = vmatpush1.bf16.msra.mxu0 0
        %1440 = vmatprep.subr.bf16.mxu0 0
        %1441 = vmatpush1.bf16.msra.mxu0 0
        %1442 = vmatprep.subr.bf16.mxu0 0
        %1443 = vmatpush1.bf16.msra.mxu0 0
        %1444 = vmatprep.subr.bf16.mxu0 0
        %1445 = vmatpush1.bf16.msra.mxu0 0
        %1446 = vmatprep.subr.bf16.mxu0 0
        %1447 = vmatpush1.bf16.msra.mxu0 0
        %1448 = vmatprep.subr.bf16.mxu0 0
        %1449 = vmatpush1.bf16.msra.mxu0 0
        %1450 = vmatprep.mubr.bf16.mxu0 0
        %1451 = vmatmul.mubr.bf16.gmra.mrb[0].mxu0 %v1416
        %v1452 = vpop.f32.mrb[0].mxu0
        %v1453 = vadd.f32 0.0, %v1452
        %v1454 = vpop.f32.mrb[0].mxu0
        %v1455 = vpop.f32.mrb[0].mxu0
        %v1456 = vadd.f32 0.0, %v1455
        %v1457 = vpop.f32.mrb[0].mxu0
        %1458 = vdwg.mxu0
        %v1461 = vunpack.c.l.b16 %v1407
        %v1462 = vunpack.c.l.b16 %v1408
        %v1463 = vpack.c.b16 %v1462, %v1461
        %v1466 = vsel %vm931, %v1404, 0
        %1468 = vmatprep.subr.bf16.mxu0 0
        %1469 = vmatpush1.bf16.msra.mxu0 %v1463
        %1470 = vmatprep.subr.bf16.mxu0 0
        %1471 = vmatpush1.bf16.msra.mxu0 0
        %1472 = vmatprep.subr.bf16.mxu0 0
        %1473 = vmatpush1.bf16.msra.mxu0 0
        %1474 = vmatprep.subr.bf16.mxu0 0
        %1475 = vmatpush1.bf16.msra.mxu0 0
        %1476 = vmatprep.subr.bf16.mxu0 0
        %1477 = vmatpush1.bf16.msra.mxu0 0
        %1478 = vmatprep.subr.bf16.mxu0 0
        %1479 = vmatpush1.bf16.msra.mxu0 0
        %1480 = vmatprep.subr.bf16.mxu0 0
        %1481 = vmatpush1.bf16.msra.mxu0 0
        %1482 = vmatprep.subr.bf16.mxu0 0
        %1483 = vmatpush1.bf16.msra.mxu0 0
        %1484 = vmatprep.subr.bf16.mxu0 0
        %1485 = vmatpush1.bf16.msra.mxu0 0
        %1486 = vmatprep.subr.bf16.mxu0 0
        %1487 = vmatpush1.bf16.msra.mxu0 0
        %1488 = vmatprep.subr.bf16.mxu0 0
        %1489 = vmatpush1.bf16.msra.mxu0 0
        %1490 = vmatprep.subr.bf16.mxu0 0
        %1491 = vmatpush1.bf16.msra.mxu0 0
        %1492 = vmatprep.subr.bf16.mxu0 0
        %1493 = vmatpush1.bf16.msra.mxu0 0
        %1494 = vmatprep.subr.bf16.mxu0 0
        %1495 = vmatpush1.bf16.msra.mxu0 0
        %1496 = vmatprep.subr.bf16.mxu0 0
        %1497 = vmatpush1.bf16.msra.mxu0 0
        %1498 = vmatprep.subr.bf16.mxu0 0
        %1499 = vmatpush1.bf16.msra.mxu0 0
        %1500 = vmatprep.mubr.bf16.mxu0 0
        %1501 = vmatmul.mubr.bf16.gmra.mrb[0].mxu0 %v1466
        %v1502 = vpop.f32.mrb[0].mxu0
        %v1503 = vadd.f32 0.0, %v1502
        %v1504 = vpop.f32.mrb[0].mxu0
        %v1505 = vpop.f32.mrb[0].mxu0
        %v1506 = vadd.f32 0.0, %v1505
        %v1507 = vpop.f32.mrb[0].mxu0
        %1508 = vdwg.mxu0
        %v1509 = vsel %vm871, %v1453, 0.0
        %v1510 = vsel %vm871, %v1503, 0.0
        %v1511 = vadd.f32 %v1509, %v1510
        %v1512 = vsel %vm871, %v1456, 0.0
        %v1513 = vsel %vm871, %v1506, 0.0
        %v1514 = vadd.f32 %v1512, %v1513
        %v1515 = vld [vmem:[%s759] sm:$0x1]
        %v1517 = vlaneseq
        %v1518 = vshrl.u32 %v1517, 7
        %v1519 = vsub.s32 0, %v1518
        %v1520 = vrot.slane %v1515, %v1519
        %v1522 = vadd.f32 %v1511, %v1520
        %v1523 = vadd.f32 %v1514, %v1520
        %v1524 = vadd.f32 %v1522, %v845
        %v1525 = vadd.f32 %v1523, %v846
        %v1526 = vld [vmem:[%s762] sm:$0x1]
        %v1527 = vld [vmem:[%s765] sm:$0x1]
        %v1528 = vsel %vm871, %v1524, 0.0
        %1529 = vadd.xlane.f32.xlu0 %v1528
        %v1530 = vpop.xlane.xlu0 %1529
        %v1531 = vsel %vm871, %v1525, 0.0
        %1532 = vadd.xlane.f32.xlu0 %v1531
        %v1533 = vpop.xlane.xlu0 %1532
        %v1534 = vrcp.pop 32.0
        %v1535 = vmul.f32 %v1530, %v1534
        %v1536 = vmul.f32 %v1533, %v1534
        %v1537 = vsub.f32 %v1524, %v1535
        %v1538 = vsub.f32 %v1525, %v1536
        %v1539 = vmul.f32 %v1537, %v1537
        %v1540 = vmul.f32 %v1538, %v1538
        %v1541 = vsel %vm871, %v1539, 0.0
        %1542 = vadd.xlane.f32.xlu0 %v1541
        %v1543 = vpop.xlane.xlu0 %1542
        %v1544 = vsel %vm871, %v1540, 0.0
        %1545 = vadd.xlane.f32.xlu0 %v1544
        %v1546 = vpop.xlane.xlu0 %1545
        %v1547 = vmul.f32 %v1543, %v1534
        %v1548 = vmul.f32 %v1546, %v1534
        %v1549 = vadd.f32 %v1547, 1e-12
        %v1550 = vadd.f32 %v1548, 1e-12
        %v1551 = vrsqrt.pop %v1549
        %v1552 = vrsqrt.pop %v1550
        %v1553 = vmul.f32 %v1537, %v1551
        %v1554 = vmul.f32 %v1538, %v1552
        %v1556 = vlaneseq
        %v1557 = vshrl.u32 %v1556, 7
        %v1558 = vsub.s32 0, %v1557
        %v1559 = vrot.slane %v1526, %v1558
        %v1561 = vmul.f32 %v1553, %v1559
        %v1562 = vmul.f32 %v1554, %v1559
        %v1564 = vlaneseq
        %v1565 = vshrl.u32 %v1564, 7
        %v1566 = vsub.s32 0, %v1565
        %v1567 = vrot.slane %v1527, %v1566
        %v1569 = vadd.f32 %v1561, %v1567
        %v1570 = vadd.f32 %v1562, %v1567
        %v1571 = vpack.c.bf16 %v1570, %v1569
        %v1572 = vld [vmem:[%s770] sm:$0xf]
        %v1573 = vld [vmem:[%s770 + $0x4] sm:$0xf]
        %v1574 = vld [vmem:[%s770 + $0x8] sm:$0xf]
        %v1575 = vld [vmem:[%s770 + $0xc] sm:$0xf]
        %v1576 = vld [vmem:[%s773] sm:$0x1]
        %v1578 = vlaneseq
        %v1579 = vshrl.u32 %v1578, 7
        %v1580 = vsub.s32 0, %v1579
        %v1581 = vrot.slane %v1576, %v1580
        %v1587 = vunpack.c.l.b16 %v1572
        %v1588 = vunpack.c.l.b16 %v1573
        %v1589 = vunpack.c.l.b16 %v1574
        %v1590 = vunpack.c.l.b16 %v1575
        %v1591 = vpack.c.b16 %v1588, %v1587
        %v1592 = vpack.c.b16 %v1590, %v1589
        %v1596 = vsel %vm871, %v1571, 0
        %1598 = vmatprep.subr.bf16.mxu0 0
        %1599 = vmatpush1.bf16.msra.mxu0 %v1591
        %1600 = vmatprep.subr.bf16.mxu0 0
        %1601 = vmatpush1.bf16.msra.mxu0 %v1592
        %1602 = vmatprep.subr.bf16.mxu0 0
        %1603 = vmatpush1.bf16.msra.mxu0 0
        %1604 = vmatprep.subr.bf16.mxu0 0
        %1605 = vmatpush1.bf16.msra.mxu0 0
        %1606 = vmatprep.subr.bf16.mxu0 0
        %1607 = vmatpush1.bf16.msra.mxu0 0
        %1608 = vmatprep.subr.bf16.mxu0 0
        %1609 = vmatpush1.bf16.msra.mxu0 0
        %1610 = vmatprep.subr.bf16.mxu0 0
        %1611 = vmatpush1.bf16.msra.mxu0 0
        %1612 = vmatprep.subr.bf16.mxu0 0
        %1613 = vmatpush1.bf16.msra.mxu0 0
        %1614 = vmatprep.subr.bf16.mxu0 0
        %1615 = vmatpush1.bf16.msra.mxu0 0
        %1616 = vmatprep.subr.bf16.mxu0 0
        %1617 = vmatpush1.bf16.msra.mxu0 0
        %1618 = vmatprep.subr.bf16.mxu0 0
        %1619 = vmatpush1.bf16.msra.mxu0 0
        %1620 = vmatprep.subr.bf16.mxu0 0
        %1621 = vmatpush1.bf16.msra.mxu0 0
        %1622 = vmatprep.subr.bf16.mxu0 0
        %1623 = vmatpush1.bf16.msra.mxu0 0
        %1624 = vmatprep.subr.bf16.mxu0 0
        %1625 = vmatpush1.bf16.msra.mxu0 0
        %1626 = vmatprep.subr.bf16.mxu0 0
        %1627 = vmatpush1.bf16.msra.mxu0 0
        %1628 = vmatprep.subr.bf16.mxu0 0
        %1629 = vmatpush1.bf16.msra.mxu0 0
        %1630 = vmatprep.mubr.bf16.mxu0 0
        %1631 = vmatmul.mubr.bf16.gmra.mrb[0].mxu0 %v1596
        %v1632 = vpop.f32.mrb[0].mxu0
        %v1633 = vadd.f32 %v1581, %v1632
        %v1634 = vpop.f32.mrb[0].mxu0
        %v1635 = vpop.f32.mrb[0].mxu0
        %v1636 = vadd.f32 %v1581, %v1635
        %v1637 = vpop.f32.mrb[0].mxu0
        %1638 = vdwg.mxu0
        %v1639 = vmul.f32 %v1633, 0.5
        %v1640 = vmul.f32 %v1636, 0.5
        %v1641 = vmul.f32 %v1633, 0.044715
        %v1642 = vmul.f32 %v1636, 0.044715
        %v1643 = vmul.f32 %v1641, %v1633
        %v1644 = vmul.f32 %v1642, %v1636
        %v1645 = vmul.f32 %v1643, %v1633
        %v1646 = vmul.f32 %v1644, %v1636
        %v1647 = vadd.f32 %v1633, %v1645
        %v1648 = vadd.f32 %v1636, %v1646
        %v1649 = vmul.f32 %v1647, 0.7978846
        %v1650 = vmul.f32 %v1648, 0.7978846
        %v1651 = vtanh.pop %v1649
        %v1652 = vtanh.pop %v1650
        %v1653 = vadd.f32 %v1651, 1.0
        %v1654 = vadd.f32 %v1652, 1.0
        %v1655 = vmul.f32 %v1639, %v1653
        %v1656 = vmul.f32 %v1640, %v1654
        %v1657 = vpack.c.bf16 %v1656, %v1655
        %v1658 = vld [vmem:[%s778] sm:$0xf]
        %v1659 = vld [vmem:[%s778 + $0x4] sm:$0xf]
        %v1660 = vld [vmem:[%s778 + $0x8] sm:$0xf]
        %v1661 = vld [vmem:[%s778 + $0xc] sm:$0xf]
        %v1662 = vld [vmem:[%s778 + $0x10] sm:$0xf]
        %v1663 = vld [vmem:[%s778 + $0x14] sm:$0xf]
        %v1664 = vld [vmem:[%s778 + $0x18] sm:$0xf]
        %v1665 = vld [vmem:[%s778 + $0x1c] sm:$0xf]
        %v1666 = vld [vmem:[%s781] sm:$0x1]
        %v1668 = vlaneseq
        %v1669 = vshrl.u32 %v1668, 7
        %v1670 = vsub.s32 0, %v1669
        %v1671 = vrot.slane %v1666, %v1670
        %v1681 = vunpack.c.l.b16 %v1658
        %v1682 = vunpack.c.l.b16 %v1659
        %v1683 = vunpack.c.l.b16 %v1660
        %v1684 = vunpack.c.l.b16 %v1661
        %v1685 = vunpack.c.l.b16 %v1662
        %v1686 = vunpack.c.l.b16 %v1663
        %v1687 = vunpack.c.l.b16 %v1664
        %v1688 = vunpack.c.l.b16 %v1665
        %v1689 = vpack.c.b16 %v1682, %v1681
        %v1690 = vpack.c.b16 %v1684, %v1683
        %v1691 = vpack.c.b16 %v1686, %v1685
        %v1692 = vpack.c.b16 %v1688, %v1687
        %vm1697 = vcmask 523264
        %v1699 = vsel %vm1697, %v1657, 0
        %1701 = vmatprep.subr.bf16.mxu0 0
        %1702 = vmatpush1.bf16.msra.mxu0 %v1689
        %1703 = vmatprep.subr.bf16.mxu0 0
        %1704 = vmatpush1.bf16.msra.mxu0 %v1690
        %1705 = vmatprep.subr.bf16.mxu0 0
        %1706 = vmatpush1.bf16.msra.mxu0 %v1691
        %1707 = vmatprep.subr.bf16.mxu0 0
        %1708 = vmatpush1.bf16.msra.mxu0 %v1692
        %1709 = vmatprep.subr.bf16.mxu0 0
        %1710 = vmatpush1.bf16.msra.mxu0 0
        %1711 = vmatprep.subr.bf16.mxu0 0
        %1712 = vmatpush1.bf16.msra.mxu0 0
        %1713 = vmatprep.subr.bf16.mxu0 0
        %1714 = vmatpush1.bf16.msra.mxu0 0
        %1715 = vmatprep.subr.bf16.mxu0 0
        %1716 = vmatpush1.bf16.msra.mxu0 0
        %1717 = vmatprep.subr.bf16.mxu0 0
        %1718 = vmatpush1.bf16.msra.mxu0 0
        %1719 = vmatprep.subr.bf16.mxu0 0
        %1720 = vmatpush1.bf16.msra.mxu0 0
        %1721 = vmatprep.subr.bf16.mxu0 0
        %1722 = vmatpush1.bf16.msra.mxu0 0
        %1723 = vmatprep.subr.bf16.mxu0 0
        %1724 = vmatpush1.bf16.msra.mxu0 0
        %1725 = vmatprep.subr.bf16.mxu0 0
        %1726 = vmatpush1.bf16.msra.mxu0 0
        %1727 = vmatprep.subr.bf16.mxu0 0
        %1728 = vmatpush1.bf16.msra.mxu0 0
        %1729 = vmatprep.subr.bf16.mxu0 0
        %1730 = vmatpush1.bf16.msra.mxu0 0
        %1731 = vmatprep.subr.bf16.mxu0 0
        %1732 = vmatpush1.bf16.msra.mxu0 0
        %1733 = vmatprep.mubr.bf16.mxu0 0
        %1734 = vmatmul.mubr.bf16.gmra.mrb[0].mxu0 %v1699
        %v1735 = vpop.f32.mrb[0].mxu0
        %v1736 = vadd.f32 %v1671, %v1735
        %v1737 = vpop.f32.mrb[0].mxu0
        %v1738 = vpop.f32.mrb[0].mxu0
        %v1739 = vadd.f32 %v1671, %v1738
        %v1740 = vpop.f32.mrb[0].mxu0
        %1741 = vdwg.mxu0
        %v1742 = vadd.f32 %v1736, %v1569
        %v1743 = vadd.f32 %v1739, %v1570
        %v1744 = vld [vmem:[%s784] sm:$0x1]
        %v1745 = vld [vmem:[%s787] sm:$0x1]
        %v1746 = vsel %vm871, %v1742, 0.0
        %1747 = vadd.xlane.f32.xlu0 %v1746
        %v1748 = vpop.xlane.xlu0 %1747
        %v1749 = vsel %vm871, %v1743, 0.0
        %1750 = vadd.xlane.f32.xlu0 %v1749
        %v1751 = vpop.xlane.xlu0 %1750
        %v1752 = vmul.f32 %v1748, %v1534
        %v1753 = vmul.f32 %v1751, %v1534
        %v1754 = vsub.f32 %v1742, %v1752
        %v1755 = vsub.f32 %v1743, %v1753
        %v1756 = vmul.f32 %v1754, %v1754
        %v1757 = vmul.f32 %v1755, %v1755
        %v1758 = vsel %vm871, %v1756, 0.0
        %1759 = vadd.xlane.f32.xlu0 %v1758
        %v1760 = vpop.xlane.xlu0 %1759
        %v1761 = vsel %vm871, %v1757, 0.0
        %1762 = vadd.xlane.f32.xlu0 %v1761
        %v1763 = vpop.xlane.xlu0 %1762
        %v1764 = vmul.f32 %v1760, %v1534
        %v1765 = vmul.f32 %v1763, %v1534
        %v1766 = vadd.f32 %v1764, 1e-12
        %v1767 = vadd.f32 %v1765, 1e-12
        %v1768 = vrsqrt.pop %v1766
        %v1769 = vrsqrt.pop %v1767
        %v1770 = vmul.f32 %v1754, %v1768
        %v1771 = vmul.f32 %v1755, %v1769
        %v1773 = vlaneseq
        %v1774 = vshrl.u32 %v1773, 7
        %v1775 = vsub.s32 0, %v1774
        %v1776 = vrot.slane %v1744, %v1775
        %v1778 = vmul.f32 %v1770, %v1776
        %v1779 = vmul.f32 %v1771, %v1776
        %v1781 = vlaneseq
        %v1782 = vshrl.u32 %v1781, 7
        %v1783 = vsub.s32 0, %v1782
        %v1784 = vrot.slane %v1745, %v1783
        %v1786 = vadd.f32 %v1778, %v1784
        %v1787 = vadd.f32 %v1779, %v1784
        %1788 = vst.msk [vmem:[#allocation2] sm:$0xff] %vm871, %v1786
        %1789 = vst.msk [vmem:[#allocation2 + $0x8] sm:$0xff] %vm871, %v1787
        %p1790 = scmp.eq.s32.totalorder %s32, 1
        // Predicated region
        $region105: #{bert_classifier_forward.1} parent=99 // pred_check
          %p1791 = pneg %p1790
        $region106: #{bert_classifier_forward.1} parent=99 // pred_check_branch
          %1793 = sbr.rel (%p1791) target = $region108
        $region107: #{bert_classifier_forward.1} parent=99 // pred_region
          %v1794 = vpack.c.bf16 %v1786, %v1786
          %v1795 = vpack.c.bf16 %v1787, %v1787
          %v1796 = vld [vmem:[%s16] sm:$0xf]
          %v1797 = vld [vmem:[%s16 + $0x4] sm:$0xf]
          %v1798 = vld [vmem:[%s16 + $0x8] sm:$0xf]
          %v1799 = vld [vmem:[%s16 + $0xc] sm:$0xf]
          %v1800 = vld [vmem:[%s17] sm:$0x1]
          %v1802 = vlaneseq
          %v1803 = vshrl.u32 %v1802, 7
          %v1804 = vsub.s32 0, %v1803
          %v1805 = vrot.slane %v1800, %v1804
          %v1809 = vunpack.c.l.b16 %v1794
          %v1810 = vunpack.c.l.b16 %v1795
          %v1811 = vrot.slane %v1810, 7
          %vm1812 = vcmask 1041409
          %v1813 = vsel %vm1812, %v1811, %v1809
          %v1814 = vpack.c.b16 %v1813, %v1813
          %v1819 = vunpack.c.l.b16 %v1796
          %v1820 = vunpack.c.l.b16 %v1797
          %v1821 = vunpack.c.l.b16 %v1798
          %v1822 = vunpack.c.l.b16 %v1799
          %v1823 = vpack.c.b16 %v1820, %v1819
          %v1824 = vpack.c.b16 %v1822, %v1821
          %v1828 = vsel %vm871, %v1814, 0
          %1830 = vmatprep.subr.bf16.mxu0 0
          %1831 = vmatpush1.bf16.msra.mxu0 %v1823
          %1832 = vmatprep.subr.bf16.mxu0 0
          %1833 = vmatpush1.bf16.msra.mxu0 %v1824
          %1834 = vmatprep.subr.bf16.mxu0 0
          %1835 = vmatpush1.bf16.msra.mxu0 0
          %1836 = vmatprep.subr.bf16.mxu0 0
          %1837 = vmatpush1.bf16.msra.mxu0 0
          %1838 = vmatprep.subr.bf16.mxu0 0
          %1839 = vmatpush1.bf16.msra.mxu0 0
          %1840 = vmatprep.subr.bf16.mxu0 0
          %1841 = vmatpush1.bf16.msra.mxu0 0
          %1842 = vmatprep.subr.bf16.mxu0 0
          %1843 = vmatpush1.bf16.msra.mxu0 0
          %1844 = vmatprep.subr.bf16.mxu0 0
          %1845 = vmatpush1.bf16.msra.mxu0 0
          %1846 = vmatprep.subr.bf16.mxu0 0
          %1847 = vmatpush1.bf16.msra.mxu0 0
          %1848 = vmatprep.subr.bf16.mxu0 0
          %1849 = vmatpush1.bf16.msra.mxu0 0
          %1850 = vmatprep.subr.bf16.mxu0 0
          %1851 = vmatpush1.bf16.msra.mxu0 0
          %1852 = vmatprep.subr.bf16.mxu0 0
          %1853 = vmatpush1.bf16.msra.mxu0 0
          %1854 = vmatprep.subr.bf16.mxu0 0
          %1855 = vmatpush1.bf16.msra.mxu0 0
          %1856 = vmatprep.subr.bf16.mxu0 0
          %1857 = vmatpush1.bf16.msra.mxu0 0
          %1858 = vmatprep.subr.bf16.mxu0 0
          %1859 = vmatpush1.bf16.msra.mxu0 0
          %1860 = vmatprep.subr.bf16.mxu0 0
          %1861 = vmatpush1.bf16.msra.mxu0 0
          %1862 = vmatprep.mubr.bf16.mxu0 0
          %1863 = vmatmul.mubr.bf16.gmra.mrb[0].mxu0 %v1828
          %v1864 = vpop.f32.mrb[0].mxu0
          %v1865 = vadd.f32 %v1805, %v1864
          %v1866 = vpop.f32.mrb[0].mxu0
          %v1867 = vpop.f32.mrb[0].mxu0
          %v1868 = vpop.f32.mrb[0].mxu0
          %1869 = vdwg.mxu0
          %v1870 = vtanh.pop %v1865
          %v1871 = vpack.c.bf16 %v1870, %v1870
          %v1872 = vld [vmem:[%s18] sm:$0xf]
          %v1873 = vld [vmem:[%s18 + $0x4] sm:$0xf]
          %v1874 = vld [vmem:[%s18 + $0x8] sm:$0xf]
          %v1875 = vld [vmem:[%s18 + $0xc] sm:$0xf]
          %v1876 = vld [vmem:[%s19] sm:$0x1]
          %v1878 = vlaneseq
          %v1879 = vshrl.u32 %v1878, 7
          %v1880 = vsub.s32 0, %v1879
          %v1881 = vrot.slane %v1876, %v1880
          %v1887 = vunpack.c.l.b16 %v1872
          %v1888 = vunpack.c.l.b16 %v1873
          %v1889 = vunpack.c.l.b16 %v1874
          %v1890 = vunpack.c.l.b16 %v1875
          %v1891 = vpack.c.b16 %v1888, %v1887
          %v1892 = vpack.c.b16 %v1890, %v1889
          %v1896 = vsel %vm871, %v1871, 0
          %1898 = vmatprep.subr.bf16.mxu0 0
          %1899 = vmatpush1.bf16.msra.mxu0 %v1891
          %1900 = vmatprep.subr.bf16.mxu0 0
          %1901 = vmatpush1.bf16.msra.mxu0 %v1892
          %1902 = vmatprep.subr.bf16.mxu0 0
          %1903 = vmatpush1.bf16.msra.mxu0 0
          %1904 = vmatprep.subr.bf16.mxu0 0
          %1905 = vmatpush1.bf16.msra.mxu0 0
          %1906 = vmatprep.subr.bf16.mxu0 0
          %1907 = vmatpush1.bf16.msra.mxu0 0
          %1908 = vmatprep.subr.bf16.mxu0 0
          %1909 = vmatpush1.bf16.msra.mxu0 0
          %1910 = vmatprep.subr.bf16.mxu0 0
          %1911 = vmatpush1.bf16.msra.mxu0 0
          %1912 = vmatprep.subr.bf16.mxu0 0
          %1913 = vmatpush1.bf16.msra.mxu0 0
          %1914 = vmatprep.subr.bf16.mxu0 0
          %1915 = vmatpush1.bf16.msra.mxu0 0
          %1916 = vmatprep.subr.bf16.mxu0 0
          %1917 = vmatpush1.bf16.msra.mxu0 0
          %1918 = vmatprep.subr.bf16.mxu0 0
          %1919 = vmatpush1.bf16.msra.mxu0 0
          %1920 = vmatprep.subr.bf16.mxu0 0
          %1921 = vmatpush1.bf16.msra.mxu0 0
          %1922 = vmatprep.subr.bf16.mxu0 0
          %1923 = vmatpush1.bf16.msra.mxu0 0
          %1924 = vmatprep.subr.bf16.mxu0 0
          %1925 = vmatpush1.bf16.msra.mxu0 0
          %1926 = vmatprep.subr.bf16.mxu0 0
          %1927 = vmatpush1.bf16.msra.mxu0 0
          %1928 = vmatprep.subr.bf16.mxu0 0
          %1929 = vmatpush1.bf16.msra.mxu0 0
          %1930 = vmatprep.mubr.bf16.mxu0 0
          %1931 = vmatmul.mubr.bf16.gmra.mrb[0].mxu0 %v1896
          %v1932 = vpop.f32.mrb[0].mxu0
          %v1933 = vadd.f32 %v1881, %v1932
          %v1934 = vpop.f32.mrb[0].mxu0
          %v1935 = vpop.f32.mrb[0].mxu0
          %v1936 = vpop.f32.mrb[0].mxu0
          %1937 = vdwg.mxu0
          %vm1938 = vcmask 25600
          %v1939 = vsel %vm1938, %v1933, -inf
          %1940 = vmax.xlane.f32.xlu0 %v1939
          %v1941 = vpop.xlane.xlu0 %1940
          %v1942 = vsub.f32 %v1933, %v1941
          %v1943 = vmul.f32 %v1942, 1.442695
          %v1944 = vpow.pop %v1943
          %v1945 = vsel %vm1938, %v1944, 0.0
          %1946 = vadd.xlane.f32.xlu0 %v1945
          %v1947 = vpop.xlane.xlu0 %1946
          %v1948 = vrcp.pop %v1947
          %v1949 = vmul.f32 %v1944, %v1948
          %1950 = vst.msk [vmem:[#allocation3] sm:$0x3] %vm1938, %v1949
        $region108: #{bert_classifier_forward.1} parent=99 // pred_fallthru
          _
        // Predicated region
        $region109: #{bert_classifier_forward.1} parent=99 // pred_check
          %p1951 = pneg %p525
        $region110: #{bert_classifier_forward.1} parent=99 // pred_check_branch
          %1953 = sbr.rel (%p1951) target = $region112
        $region111: #{bert_classifier_forward.1} parent=99 // pred_region
          %s1955 = ssub.s32 32, 32
          %1956 = vsyncadd [#allocation4], %s1955
          %s1958 = sshll.u32 [#allocation3], 4
          %s1959 = int_to_ptr.vmem [resolvable:$true] %s1958
          %1961 = dma.vmem_to_hbm [thread:$0]  %s1959, 32, %s20, [#allocation4]
        $region112: #{bert_classifier_forward.1} parent=99 // pred_fallthru
          _
        // Predicated region
        $region113: #{bert_classifier_forward.1} parent=99 // pred_check
          %p1962 = pneg %p525
        $region114: #{bert_classifier_forward.1} parent=99 // pred_check_branch
          %1964 = sbr.rel (%p1962) target = $region116
        $region115: #{bert_classifier_forward.1} parent=99 // pred_region
          %1965 = dma.done [#allocation4], 32
        $region116: #{bert_classifier_forward.1} parent=99 // pred_fallthru
          _
      $region100: #{bert_classifier_forward.1} parent=5 // pred_fallthru
        _
      %p1966 = scmp.le.s32.totalorder 2, %s27
      // Predicated region
      $region117: #{bert_classifier_forward.1} parent=5 // pred_check
        %p1967 = pneg %p1966
      $region118: #{bert_classifier_forward.1} parent=5 // pred_check_branch
        %1969 = sbr.rel (%p1967) target = $region120
      $region119: #{bert_classifier_forward.1} parent=5 // pred_region
        %s1970 = ssub.s32 %s27, 2
      $region120: #{bert_classifier_forward.1} parent=5 // pred_fallthru
        _
    $region6: #{bert_classifier_forward.1} parent=1 // loop_footer
      %s31 = sadd.s32 1, %s27
    $region7: #{bert_classifier_forward.1} parent=1 // loop_footer_branch
      %26 = sbr.rel target = $region3
    $region8: #{bert_classifier_forward.1} parent=1 // loop_exit
      _
    %1971 = vsyncpa [#allocation4], 1
    %s1972 = scalar_lea.sflag [#allocation4], 1
    %1973 = vsyncpa %s1972, 1

</llo_original>
